<compile_context>
chip_gen: v6e
topology: v6e:2x2x1
jax: 0.10.0
libtpu: 0.0.40
codegen_flags: <defaults>
</compile_context>

<pallas_src>
import math
import numpy as np
import jax
import jax.numpy as jnp
from jax.experimental import pallas as pl
from jax.experimental.pallas import tpu as pltpu


# ---------------- mask generation (numpy glue, mirrors SBSM.generate_masks) ----
def generate_masks(input_size, window_size, stride):
    H, W = input_size
    rows = np.arange(0 + stride - window_size, H, stride)
    cols = np.arange(0 + stride - window_size, W, stride)
    mask_num = len(rows) * len(cols)
    masks = np.ones((mask_num, H, W), dtype=np.uint8)
    i = 0
    for r in rows:
        for c in cols:
            r1 = max(int(r), 0)
            r2 = min(int(r) + window_size, H)
            c1 = max(int(c), 0)
            c2 = min(int(c) + window_size, W)
            masks[i, r1:r2, c1:c2] = 0
            i += 1
    return masks.reshape(-1, 1, H, W)


def _round_up(v, m):
    return -(-v // m) * m


# ---------------- fused Pallas kernel -------------------------------------------
def _make_sbsm_kernel(n_real, tile_n, tiles_per_core):
    groups = tile_n // 8

    def kernel(m_ref, xw_ref, fq_ref, od_ref, o_ref):
        # m_ref : (tile_n, HWp) bf16  mask rows (exact 0/1)
        # xw_ref: (HWp, Fp)     bf16  channel-folded x . W
        # fq_ref: (1, Fp)       f32   query embedding  model(mask * x_q)
        # od_ref: (1, 1)        f32   o_dist scalar (SMEM)
        # o_ref : (8, HWp)      f32   per-core partial saliency; resident
        #                             accumulator across the "arbitrary" axis
        c = pl.program_id(0)
        n = pl.program_id(1)

        @pl.when(n == 0)
        def _():
            o_ref[...] = jnp.zeros_like(o_ref)

        m = m_ref[...]                                                    # bf16
        # masked embedding on the native bf16 MXU path, f32 accumulation
        f_m = jnp.dot(m, xw_ref[...], preferred_element_type=jnp.float32)  # (tile_n, Fp)
        diff = f_m - fq_ref[...]
        m_dist = jnp.sqrt(jnp.sum(diff * diff, axis=-1, keepdims=True))    # (tile_n, 1)
        w = jnp.maximum(m_dist - od_ref[0, 0], 0.0)                        # (tile_n, 1)

        # zero padded (all-ones) rows n >= N so the sum(w) - sum(w*m) split is exact
        base = (c * tiles_per_core + n) * tile_n
        row = base + jax.lax.broadcasted_iota(jnp.int32, (tile_n, 1), 0)
        w = jnp.where(row < n_real, w, 0.0)

        # saliency numerator: sum_n w_n*(1 - m_n) == broadcast(sum w) - sum(w*m),
        # accumulated per sublane group -> full unmasked (8, HWp) stores, no XLU
        wm = w * m.astype(jnp.float32)                                     # (tile_n, HWp)
        wm_g = jnp.sum(wm.reshape(groups, 8, wm.shape[-1]), axis=0)        # (8, HWp)
        w_g = jnp.sum(w.reshape(groups, 8, 1), axis=0)                     # (8, 1)
        o_ref[...] += w_g - wm_g

    return kernel


def sbsm_fused(masks_p, xw_p, fq_p, o_dist, n_real, *, n_cores, tile_n):
    Np, HWp = masks_p.shape
    Fp = xw_p.shape[1]
    tiles_per_core = Np // (n_cores * tile_n)
    kernel = _make_sbsm_kernel(n_real, tile_n, tiles_per_core)

    # explicit VMEM budget (default scoped limit is 16/32 MiB; v7x has 64 MiB total)
    vmem_bytes = int(
        2 * tile_n * HWp * 2        # double-buffered bf16 mask tiles
        + HWp * Fp * 2              # xW (single-buffered when supported)
        + 2 * Fp * 4                # f_q
        + 8 * HWp * 4               # resident output accumulator block
        + tile_n * HWp * 4          # in-kernel f32 w*m temporary
        + 4 * tile_n * Fp * 4       # f_m / diff temporaries
        + (4 << 20))                # headroom
    vmem_bytes = min(max(vmem_bytes, 16 << 20), 48 << 20)

    def build(single_buffer_invariants):
        inv_kw = ({"pipeline_mode": pl.Buffered(1)}
                  if single_buffer_invariants else {})
        return pl.pallas_call(
            kernel,
            out_shape=jax.ShapeDtypeStruct((n_cores * 8, HWp), jnp.float32),
            grid=(n_cores, tiles_per_core),
            in_specs=[
                pl.BlockSpec((tile_n, HWp),
                             lambda c, n: (c * tiles_per_core + n, 0)),
                pl.BlockSpec((HWp, Fp), lambda c, n: (0, 0), **inv_kw),
                pl.BlockSpec((1, Fp), lambda c, n: (0, 0), **inv_kw),
                pl.BlockSpec(memory_space=pltpu.MemorySpace.SMEM),
            ],
            out_specs=pl.BlockSpec((8, HWp), lambda c, n: (c, 0)),
            compiler_params=pltpu.CompilerParams(
                dimension_semantics=("parallel", "arbitrary"),
                vmem_limit_bytes=vmem_bytes),
        )

    try:
        out = build(True)(masks_p, xw_p, fq_p, o_dist)
        return jax.block_until_ready(out)
    except Exception:
        # pl.Buffered(1) single-buffering not supported by this jax build:
        # fall back to default double-buffering of the grid-invariant inputs.
        return build(False)(masks_p, xw_p, fq_p, o_dist)


# ---------------- query-independent precompute (hoisted / cacheable) -------------
def precompute_mask_buffers(masks, *, n_cores=1, tile_n=128):
    """Depends only on the mask set: build once, reuse across saliency queries.
    n_cores=1 for v5e/v6e (single TensorCore); use n_cores=2 on v7x."""
    assert tile_n % 16 == 0, "tile_n must be a multiple of 16 (bf16 sublane packing)"
    N, _, H, W = masks.shape
    HW = H * W
    HWp = _round_up(HW, 128)
    Np = _round_up(N, n_cores * tile_n)

    masks_hw = jnp.asarray(masks).reshape(N, HW)
    count = N - jnp.sum(masks_hw.astype(jnp.float32), axis=0)       # (HW,)
    inv_count = 1.0 / jnp.maximum(count, 1.0)                       # guard count==0

    # padded mask rows/cols are all-ones -> (1 - m) == 0 -> contribute nothing
    masks_p = jnp.ones((Np, HWp), jnp.bfloat16).at[:N, :HW].set(
        masks_hw.astype(jnp.bfloat16))
    return {"masks_p": masks_p, "inv_count": inv_count, "N": N,
            "H": H, "W": W, "n_cores": n_cores, "tile_n": tile_n}


# ---------------- forward (mode='mask') ------------------------------------------
def sbsm_mask_forward(x_q, x, mask, mask_buffers, Wlin):
    """x_q: (1,C,H,W), x: (1,C,H,W), mask: (1,1,H,W), Wlin: (C*H*W, F)."""
    masks_p = mask_buffers["masks_p"]
    inv_count = mask_buffers["inv_count"]
    N = mask_buffers["N"]
    H, W = mask_buffers["H"], mask_buffers["W"]
    n_cores, tile_n = mask_buffers["n_cores"], mask_buffers["tile_n"]

    _, C, _, _ = x.shape
    HW = H * W
    F = Wlin.shape[1]
    HWp = masks_p.shape[1]
    Fp = _round_up(F, 128)   # NOTE: pad to 256 on v6e/v7x if the kernel becomes MXU-bound
    hp = jax.lax.Precision.HIGHEST

    # ---- cheap wrapper precompute: channel fold + query/reference embeddings ----
    W3 = Wlin.reshape(C, HW, F)
    xw = jnp.einsum('cp,cpf->pf', x.reshape(C, HW), W3, precision=hp)      # (HW, F)
    xqw = jnp.einsum('cp,cpf->pf', x_q.reshape(C, HW), W3, precision=hp)   # (HW, F)
    xw_bf = xw.astype(jnp.bfloat16)            # cast ONCE: bf16 MXU operand
    # f_r / o_dist from the SAME bf16 xW the kernel uses -> m_dist/o_dist consistent
    f_r = jnp.sum(xw_bf.astype(jnp.float32), axis=0, keepdims=True)        # model(x)
    f_q = jnp.dot(mask.reshape(1, HW), xqw, precision=hp)                  # model(mask*x_q)
    o_dist = jnp.sqrt(jnp.sum((f_q - f_r) ** 2)).reshape(1, 1).astype(jnp.float32)

    xw_p = jnp.zeros((HWp, Fp), jnp.bfloat16).at[:HW, :F].set(xw_bf)
    fq_p = jnp.zeros((1, Fp), jnp.float32).at[:, :F].set(f_q.astype(jnp.float32))

    partials = sbsm_fused(masks_p, xw_p, fq_p, o_dist, N,
                          n_cores=n_cores, tile_n=tile_n)       # (n_cores*8, HWp)
    sal = jnp.sum(partials, axis=0)[:HW] * inv_count
    return sal.reshape(1, H, W)


# ---------------- pure-JAX reference (semantics check) ----------------------------
def reference_forward(x_q, x, mask, masks, Wlin):
    N = masks.shape[0]
    hp = jax.lax.Precision.HIGHEST
    masks_f = jnp.asarray(masks).astype(jnp.float32)

    f_q = jnp.dot((mask * x_q).reshape(1, -1), Wlin, precision=hp)
    f_r = jnp.dot(x.reshape(1, -1), Wlin, precision=hp)
    f_m = jnp.dot((masks_f * x).reshape(N, -1), Wlin, precision=hp)

    def cdist(a, b):
        return jnp.sqrt(jnp.sum((a[:, None, :] - b[None, :, :]) ** 2, axis=-1))

    o_dist = cdist(f_q, f_r)
    m_dist = cdist(f_q, f_m)
    Kmat = jnp.transpose(1.0 - masks_f, (2, 3, 1, 0)) * jnp.maximum(m_dist - o_dist, 0.0)
    # same max(count, 1) guard as the kernel path (only differs on never-covered pixels)
    count = jnp.maximum(N - masks_f.sum(axis=(0, 1)), 1.0)
    sal = jnp.transpose(Kmat.sum(-1), (2, 0, 1)) / count
    return sal


if __name__ == "__main__":
    C, H, W = 3, 16, 16
    Fdim = 32
    window_size, stride = 8, 1                    # -> 23*23 = 529 masks
                                                  #    -> 5 tiles of 128: exercises accumulation

    masks_np = generate_masks((H, W), window_size, stride)      # (529, 1, 16, 16)
    masks = jnp.asarray(masks_np)

    key = jax.random.PRNGKey(0)
    k1, k2, k3, k4 = jax.random.split(key, 4)
    x_q = jax.random.normal(k1, (1, C, H, W), jnp.float32)
    x = jax.random.normal(k2, (1, C, H, W), jnp.float32)
    mask = (jax.random.uniform(k3, (1, 1, H, W)) > 0.5).astype(jnp.float32)
    # deterministic stand-in "model": linear embedding (C*H*W -> Fdim)
    Wlin = jax.random.normal(k4, (C * H * W, Fdim), jnp.float32) / math.sqrt(C * H * W)

    # hoisted, query-independent precompute (n_cores=1: v5e/v6e; use 2 on v7x)
    buffers = precompute_mask_buffers(masks, n_cores=1, tile_n=128)

    sal = sbsm_mask_forward(x_q, x, mask, buffers, Wlin)
    sal = jax.block_until_ready(sal)

    sal_ref = reference_forward(x_q, x, mask, masks, Wlin)
    # bf16 MXU operands (masks exact, xW rounded) vs f32 HIGHEST reference:
    # tolerance covers the dtype delta; structural errors would be O(0.1-1).
    np.testing.assert_allclose(np.asarray(sal), np.asarray(sal_ref),
                               rtol=5e-2, atol=2e-2)
    print("KERNEL_OK")
</pallas_src>

<mosaic_0001>
module attributes {stable_mosaic.version = 11 : i64} {
  func.func @kernel(%arg0: i32, %arg1: i32, %arg2: memref<128x256xbf16, #tpu.memory_space<vmem>>, %arg3: memref<256x128xbf16, #tpu.memory_space<vmem>>, %arg4: memref<1x128xf32, #tpu.memory_space<vmem>>, %arg5: memref<1x1xf32, #tpu.memory_space<smem>>, %arg6: memref<8x256xf32, #tpu.memory_space<vmem>>) attributes {dimension_semantics = [#tpu.dimension_semantics<parallel>, #tpu.dimension_semantics<arbitrary>], iteration_bounds = array<i64: 1, 5>, scalar_prefetch = 0 : i64, scratch_operands = 0 : i64, tpu.core_type = #tpu.core_type<tc>, window_params = [{transform_indices = @transform_0, window_bounds = array<i64: 128, 256>}, {pipeline_mode = #tpu.pipeline_mode<synchronous>, transform_indices = @transform_1, window_bounds = array<i64: 256, 128>}, {pipeline_mode = #tpu.pipeline_mode<synchronous>, transform_indices = @transform_2, window_bounds = array<i64: 1, 128>}, {transform_indices = @transform_3, window_bounds = array<i64: 1, 1>}, {transform_indices = @transform_4, window_bounds = array<i64: 8, 256>}]} {
    %c0_i32 = arith.constant 0 : i32
    %0 = arith.cmpi eq, %arg1, %c0_i32 : i32
    %1 = arith.extui %0 : i1 to i32
    %c0_i32_0 = arith.constant 0 : i32
    %2 = arith.cmpi ne, %1, %c0_i32_0 : i32
    scf.if %2 {
      %cst_17 = arith.constant 0.000000e+00 : f32
      %40 = vector.broadcast %cst_17 : f32 to vector<8x256xf32>
      %c0_18 = arith.constant 0 : index
      %c0_19 = arith.constant 0 : index
      %41 = vector.load %arg6[%c0_18, %c0_19] : memref<8x256xf32, #tpu.memory_space<vmem>>, vector<8x256xf32>
      tpu.vector_store %arg6[%c0_18, %c0_19], %40 {strides = array<i32>} : memref<8x256xf32, #tpu.memory_space<vmem>>, vector<8x256xf32>,
    } else {
    }
    %c0 = arith.constant 0 : index
    %c0_1 = arith.constant 0 : index
    %3 = vector.load %arg2[%c0, %c0_1] : memref<128x256xbf16, #tpu.memory_space<vmem>>, vector<128x256xbf16>
    %c0_2 = arith.constant 0 : index
    %c0_3 = arith.constant 0 : index
    %4 = vector.load %arg3[%c0_2, %c0_3] : memref<256x128xbf16, #tpu.memory_space<vmem>>, vector<256x128xbf16>
    %cst = arith.constant dense<0.000000e+00> : vector<128x128xf32>
    %5 = tpu.matmul %3, %4, %cst {dimension_numbers = #tpu.dot_dimension_numbers<[1], [0], [0], [1], [0, 0, 1, 1], [], []>} : vector<128x256xbf16>, vector<256x128xbf16>, vector<128x128xf32> -> vector<128x128xf32>
    %c0_4 = arith.constant 0 : index
    %c0_5 = arith.constant 0 : index
    %6 = vector.load %arg4[%c0_4, %c0_5] : memref<1x128xf32, #tpu.memory_space<vmem>>, vector<1x128xf32>
    %7 = vector.broadcast %6 : vector<1x128xf32> to vector<128x128xf32>
    %8 = arith.subf %5, %7 : vector<128x128xf32>
    %9 = arith.mulf %8, %8 : vector<128x128xf32>
    %cst_6 = arith.constant dense<0.000000e+00> : vector<128xf32>
    %10 = vector.multi_reduction <add>, %9, %cst_6 [1] : vector<128x128xf32> to vector<128xf32>
    %11 = vector.shape_cast %10 : vector<128xf32> to vector<128x1xf32>
    %12 = math.sqrt %11 : vector<128x1xf32>
    %c0_7 = arith.constant 0 : index
    %c0_8 = arith.constant 0 : index
    %13 = memref.load %arg5[%c0_7, %c0_8] : memref<1x1xf32, #tpu.memory_space<smem>>
    %14 = vector.broadcast %13 : f32 to vector<128x1xf32>
    %15 = arith.subf %12, %14 : vector<128x1xf32>
    %cst_9 = arith.constant 0.000000e+00 : f32
    %16 = vector.broadcast %cst_9 : f32 to vector<128x1xf32>
    %17 = arith.maximumf %15, %16 : vector<128x1xf32>
    %c5_i32 = arith.constant 5 : i32
    %18 = arith.muli %arg0, %c5_i32 : i32
    %19 = arith.addi %18, %arg1 : i32
    %c128_i32 = arith.constant 128 : i32
    %20 = arith.muli %19, %c128_i32 : i32
    %21 = tpu.iota {dimensions = array<i32: 0>} : vector<128x1xi32>
    %22 = vector.broadcast %20 : i32 to vector<128x1xi32>
    %23 = arith.addi %22, %21 : vector<128x1xi32>
    %c529_i32 = arith.constant 529 : i32
    %24 = vector.broadcast %c529_i32 : i32 to vector<128x1xi32>
    %25 = arith.cmpi slt, %23, %24 : vector<128x1xi32>
    %cst_10 = arith.constant 0.000000e+00 : f32
    %26 = vector.broadcast %cst_10 : f32 to vector<128x1xf32>
    %27 = arith.select %25, %17, %26 : vector<128x1xi1>, vector<128x1xf32>
    %28 = arith.extf %3 : vector<128x256xbf16> to vector<128x256xf32>
    %29 = vector.broadcast %27 : vector<128x1xf32> to vector<128x256xf32>
    %30 = arith.mulf %29, %28 : vector<128x256xf32>
    %31 = vector.shape_cast %30 : vector<128x256xf32> to vector<16x8x256xf32>
    %cst_11 = arith.constant dense<0.000000e+00> : vector<8x256xf32>
    %32 = vector.multi_reduction <add>, %31, %cst_11 [0] : vector<16x8x256xf32> to vector<8x256xf32>
    %33 = vector.shape_cast %27 : vector<128x1xf32> to vector<16x8x1xf32>
    %cst_12 = arith.constant dense<0.000000e+00> : vector<8x1xf32>
    %34 = vector.multi_reduction <add>, %33, %cst_12 [0] : vector<16x8x1xf32> to vector<8x1xf32>
    %c0_13 = arith.constant 0 : index
    %c0_14 = arith.constant 0 : index
    %35 = vector.load %arg6[%c0_13, %c0_14] : memref<8x256xf32, #tpu.memory_space<vmem>>, vector<8x256xf32>
    %36 = vector.broadcast %34 : vector<8x1xf32> to vector<8x256xf32>
    %37 = arith.subf %36, %32 : vector<8x256xf32>
    %38 = arith.addf %35, %37 : vector<8x256xf32>
    %c0_15 = arith.constant 0 : index
    %c0_16 = arith.constant 0 : index
    %39 = vector.load %arg6[%c0_15, %c0_16] : memref<8x256xf32, #tpu.memory_space<vmem>>, vector<8x256xf32>
    tpu.vector_store %arg6[%c0_15, %c0_16], %38 {strides = array<i32>} : memref<8x256xf32, #tpu.memory_space<vmem>>, vector<8x256xf32>,
    return
  }
  func.func @transform_0(%arg0: i32, %arg1: i32) -> (i32, i32) {
    %c5_i32 = arith.constant 5 : i32
    %0 = arith.muli %arg0, %c5_i32 : i32
    %1 = arith.addi %0, %arg1 : i32
    %c0_i32 = arith.constant 0 : i32
    %c0_i32_0 = arith.constant 0 : i32
    return %1, %c0_i32 : i32, i32
  }
  func.func @transform_1(%arg0: i32, %arg1: i32) -> (i32, i32) {
    %c0_i32 = arith.constant 0 : i32
    %c0_i32_0 = arith.constant 0 : i32
    %c0_i32_1 = arith.constant 0 : i32
    return %c0_i32, %c0_i32_0 : i32, i32
  }
  func.func @transform_2(%arg0: i32, %arg1: i32) -> (i32, i32) {
    %c0_i32 = arith.constant 0 : i32
    %c0_i32_0 = arith.constant 0 : i32
    %c0_i32_1 = arith.constant 0 : i32
    return %c0_i32, %c0_i32_0 : i32, i32
  }
  func.func @transform_3(%arg0: i32, %arg1: i32) -> (i32, i32) {
    %c0_i32 = arith.constant 0 : i32
    %c0_i32_0 = arith.constant 0 : i32
    %c0_i32_1 = arith.constant 0 : i32
    return %c0_i32, %c0_i32_0 : i32, i32
  }
  func.func @transform_4(%arg0: i32, %arg1: i32) -> (i32, i32) {
    %c0_i32 = arith.constant 0 : i32
    %c0_i32_0 = arith.constant 0 : i32
    return %arg0, %c0_i32 : i32, i32
  }
}

module attributes {stable_mosaic.version = 11 : i64} {
  func.func @kernel(%arg0: i32, %arg1: i32, %arg2: memref<128x256xbf16, #tpu.memory_space<vmem>>, %arg3: memref<256x128xbf16, #tpu.memory_space<vmem>>, %arg4: memref<1x128xf32, #tpu.memory_space<vmem>>, %arg5: memref<1x1xf32, #tpu.memory_space<smem>>, %arg6: memref<8x256xf32, #tpu.memory_space<vmem>>) attributes {dimension_semantics = [#tpu.dimension_semantics<parallel>, #tpu.dimension_semantics<arbitrary>], iteration_bounds = array<i64: 1, 5>, scalar_prefetch = 0 : i64, scratch_operands = 0 : i64, tpu.core_type = #tpu.core_type<tc>, window_params = [{transform_indices = @transform_0, window_bounds = array<i64: 128, 256>}, {pipeline_mode = #tpu.pipeline_mode<synchronous>, transform_indices = @transform_1, window_bounds = array<i64: 256, 128>}, {pipeline_mode = #tpu.pipeline_mode<synchronous>, transform_indices = @transform_2, window_bounds = array<i64: 1, 128>}, {transform_indices = @transform_3, window_bounds = array<i64: 1, 1>}, {transform_indices = @transform_4, window_bounds = array<i64: 8, 256>}]} {
    %c0_i32 = arith.constant 0 : i32
    %0 = arith.cmpi eq, %arg1, %c0_i32 : i32
    %1 = arith.extui %0 : i1 to i32
    %c0_i32_0 = arith.constant 0 : i32
    %2 = arith.cmpi ne, %1, %c0_i32_0 : i32
    scf.if %2 {
      %cst_17 = arith.constant 0.000000e+00 : f32
      %40 = vector.broadcast %cst_17 : f32 to vector<8x256xf32>
      %c0_18 = arith.constant 0 : index
      %c0_19 = arith.constant 0 : index
      %41 = vector.load %arg6[%c0_18, %c0_19] : memref<8x256xf32, #tpu.memory_space<vmem>>, vector<8x256xf32>
      tpu.vector_store %arg6[%c0_18, %c0_19], %40 {strides = array<i32>} : memref<8x256xf32, #tpu.memory_space<vmem>>, vector<8x256xf32>,
    } else {
    }
    %c0 = arith.constant 0 : index
    %c0_1 = arith.constant 0 : index
    %3 = vector.load %arg2[%c0, %c0_1] : memref<128x256xbf16, #tpu.memory_space<vmem>>, vector<128x256xbf16>
    %c0_2 = arith.constant 0 : index
    %c0_3 = arith.constant 0 : index
    %4 = vector.load %arg3[%c0_2, %c0_3] : memref<256x128xbf16, #tpu.memory_space<vmem>>, vector<256x128xbf16>
    %cst = arith.constant dense<0.000000e+00> : vector<128x128xf32>
    %5 = tpu.matmul %3, %4, %cst {dimension_numbers = #tpu.dot_dimension_numbers<[1], [0], [0], [1], [0, 0, 1, 1], [], []>} : vector<128x256xbf16>, vector<256x128xbf16>, vector<128x128xf32> -> vector<128x128xf32>
    %c0_4 = arith.constant 0 : index
    %c0_5 = arith.constant 0 : index
    %6 = vector.load %arg4[%c0_4, %c0_5] : memref<1x128xf32, #tpu.memory_space<vmem>>, vector<1x128xf32>
    %7 = vector.broadcast %6 : vector<1x128xf32> to vector<128x128xf32>
    %8 = arith.subf %5, %7 : vector<128x128xf32>
    %9 = arith.mulf %8, %8 : vector<128x128xf32>
    %cst_6 = arith.constant dense<0.000000e+00> : vector<128xf32>
    %10 = vector.multi_reduction <add>, %9, %cst_6 [1] : vector<128x128xf32> to vector<128xf32>
    %11 = vector.shape_cast %10 : vector<128xf32> to vector<128x1xf32>
    %12 = math.sqrt %11 : vector<128x1xf32>
    %c0_7 = arith.constant 0 : index
    %c0_8 = arith.constant 0 : index
    %13 = memref.load %arg5[%c0_7, %c0_8] : memref<1x1xf32, #tpu.memory_space<smem>>
    %14 = vector.broadcast %13 : f32 to vector<128x1xf32>
    %15 = arith.subf %12, %14 : vector<128x1xf32>
    %cst_9 = arith.constant 0.000000e+00 : f32
    %16 = vector.broadcast %cst_9 : f32 to vector<128x1xf32>
    %17 = arith.maximumf %15, %16 : vector<128x1xf32>
    %c5_i32 = arith.constant 5 : i32
    %18 = arith.muli %arg0, %c5_i32 : i32
    %19 = arith.addi %18, %arg1 : i32
    %c128_i32 = arith.constant 128 : i32
    %20 = arith.muli %19, %c128_i32 : i32
    %21 = tpu.iota {dimensions = array<i32: 0>} : vector<128x1xi32>
    %22 = vector.broadcast %20 : i32 to vector<128x1xi32>
    %23 = arith.addi %22, %21 : vector<128x1xi32>
    %c529_i32 = arith.constant 529 : i32
    %24 = vector.broadcast %c529_i32 : i32 to vector<128x1xi32>
    %25 = arith.cmpi slt, %23, %24 : vector<128x1xi32>
    %cst_10 = arith.constant 0.000000e+00 : f32
    %26 = vector.broadcast %cst_10 : f32 to vector<128x1xf32>
    %27 = arith.select %25, %17, %26 : vector<128x1xi1>, vector<128x1xf32>
    %28 = arith.extf %3 : vector<128x256xbf16> to vector<128x256xf32>
    %29 = vector.broadcast %27 : vector<128x1xf32> to vector<128x256xf32>
    %30 = arith.mulf %29, %28 : vector<128x256xf32>
    %31 = vector.shape_cast %30 : vector<128x256xf32> to vector<16x8x256xf32>
    %cst_11 = arith.constant dense<0.000000e+00> : vector<8x256xf32>
    %32 = vector.multi_reduction <add>, %31, %cst_11 [0] : vector<16x8x256xf32> to vector<8x256xf32>
    %33 = vector.shape_cast %27 : vector<128x1xf32> to vector<16x8x1xf32>
    %cst_12 = arith.constant dense<0.000000e+00> : vector<8x1xf32>
    %34 = vector.multi_reduction <add>, %33, %cst_12 [0] : vector<16x8x1xf32> to vector<8x1xf32>
    %c0_13 = arith.constant 0 : index
    %c0_14 = arith.constant 0 : index
    %35 = vector.load %arg6[%c0_13, %c0_14] : memref<8x256xf32, #tpu.memory_space<vmem>>, vector<8x256xf32>
    %36 = vector.broadcast %34 : vector<8x1xf32> to vector<8x256xf32>
    %37 = arith.subf %36, %32 : vector<8x256xf32>
    %38 = arith.addf %35, %37 : vector<8x256xf32>
    %c0_15 = arith.constant 0 : index
    %c0_16 = arith.constant 0 : index
    %39 = vector.load %arg6[%c0_15, %c0_16] : memref<8x256xf32, #tpu.memory_space<vmem>>, vector<8x256xf32>
    tpu.vector_store %arg6[%c0_15, %c0_16], %38 {strides = array<i32>} : memref<8x256xf32, #tpu.memory_space<vmem>>, vector<8x256xf32>,
    return
  }
  func.func @transform_0(%arg0: i32, %arg1: i32) -> (i32, i32) {
    %c5_i32 = arith.constant 5 : i32
    %0 = arith.muli %arg0, %c5_i32 : i32
    %1 = arith.addi %0, %arg1 : i32
    %c0_i32 = arith.constant 0 : i32
    %c0_i32_0 = arith.constant 0 : i32
    return %1, %c0_i32 : i32, i32
  }
  func.func @transform_1(%arg0: i32, %arg1: i32) -> (i32, i32) {
    %c0_i32 = arith.constant 0 : i32
    %c0_i32_0 = arith.constant 0 : i32
    %c0_i32_1 = arith.constant 0 : i32
    return %c0_i32, %c0_i32_0 : i32, i32
  }
  func.func @transform_2(%arg0: i32, %arg1: i32) -> (i32, i32) {
    %c0_i32 = arith.constant 0 : i32
    %c0_i32_0 = arith.constant 0 : i32
    %c0_i32_1 = arith.constant 0 : i32
    return %c0_i32, %c0_i32_0 : i32, i32
  }
  func.func @transform_3(%arg0: i32, %arg1: i32) -> (i32, i32) {
    %c0_i32 = arith.constant 0 : i32
    %c0_i32_0 = arith.constant 0 : i32
    %c0_i32_1 = arith.constant 0 : i32
    return %c0_i32, %c0_i32_0 : i32, i32
  }
  func.func @transform_4(%arg0: i32, %arg1: i32) -> (i32, i32) {
    %c0_i32 = arith.constant 0 : i32
    %c0_i32_0 = arith.constant 0 : i32
    return %arg0, %c0_i32 : i32, i32
  }
}

</mosaic_0001>

<llo_original>
// kernel: tpu_custom_call.1
$region0: #{tpu_custom_call.1}
  #allocation0 [shape = 'u32[]', space=smem, size = 0x4, offset = 0x4, fixed_abs, tag = 'smem constant byte address 0x4 - core index']
  #allocation1 [shape = 'u32[144,128]{1,0:T(1,128)}', space=vmem, size = 0x12000, scoped, tag = 'internal scratch']
  #allocation2 [shape = 'f32[1,1]{1,0:T(1,128)S(6)}', space=smem, size = 0x200, scoped, tag = 'scoped memory for tpu_custom_call.1']
  %s0 = inlined_call_operand.hbm [shape: bf16[640,256], index: 0, kind: input, shape index: {}]
  %s1 = inlined_call_operand.hbm [shape: bf16[256,128], index: 1, kind: input, shape index: {}]
  %s2 = inlined_call_operand.vmem [shape: f32[1,128], index: 2, kind: input, shape index: {}]
  %s3 = inlined_call_operand.<no memory space> [shape: f32[1,1], index: 3, kind: input, shape index: {}]
  %s4 = inlined_call_operand.hbm [shape: f32[8,256], index: 4, kind: output, shape index: {}]
  %s5 = sld [smem:[#allocation0]]
  $region61: #{tpu_custom_call.1} parent=0
    _
  %s7 = ssub.s32 1, %s5
  %s8 = scalar_select 0, %s7, %s5
  %9 = sst [smem:[#allocation2]] %s3
  $region1: #{tpu_custom_call.1} parent=0
    #allocation3 [shape = 'u8[131072]{0}', space=vmem, size = 0x20000, scoped, tag = 'input window, operand 0']
    #allocation4 [shape = 's32[2]{0}', space=sflag, size = 0x8, scoped, tag = 'scoped memory for tpu_custom_call.1']
    #allocation5 [shape = 's32[2]{0}', space=sflag, size = 0x8, scoped, tag = 'scoped memory for tpu_custom_call.1']
    #allocation6 [shape = 'u8[65536]{0}', space=vmem, size = 0x10000, scoped, tag = 'input window, operand 1, single buffered']
    #allocation7 [shape = 's32[1]{0}', space=sflag, size = 0x4, scoped, tag = 'scoped memory for tpu_custom_call.1']
    #allocation8 [shape = 'u8[8192]{0}', space=vmem, size = 0x2000, scoped, tag = 'output window, operand 0, single buffered']
    %10 = vsyncpa [#allocation4], 0
    %s11 = scalar_lea.sflag [#allocation4], 1
    %12 = vsyncpa %s11, 0
    %13 = vsyncpa [#allocation7], 0
    %14 = vsyncpa [#allocation5], 0
    loop: start=0, step=1, limit=7
    $region2: #{tpu_custom_call.1} parent=1 // loop_pre_header
      _
    $region3: #{tpu_custom_call.1} parent=1 // loop_header
      %s16 = sphi 0, %s20
      %p17 = scmp.ge.s32.totalorder %s16, 7
      %s23 = sphi 0, %s35
      %s24 = sphi 0, %s31
      %s25 = sphi 0, %s23
      %s26 = sphi 0, %s24
      %s27 = sphi 0, %s25
      %s28 = sphi 0, %s26
      %s42 = sphi 0, %s44
      %s45 = sphi 0, %s42
      %s46 = sphi 0, %s45
      %s62 = sphi 0, %s46
      %s66 = sphi 0, %s66
      %s68 = sphi 0, %s66
      %s69 = sphi 0, %s68
      %s83 = sphi 0, %s69
      %s87 = sphi 0, %s87
      %s89 = sphi 0, %s87
      %s90 = sphi 0, %s89
      %s104 = sphi 0, %s90
      %s108 = sphi 0, %s108
      %s110 = sphi 0, %s108
      %s111 = sphi 0, %s110
      %s125 = sphi 0, %s111
      %s131 = sphi 0, %s133
      %s134 = sphi 0, %s131
      %s135 = sphi 0, %s134
      %s151 = sphi 0, %s135
    $region4: #{tpu_custom_call.1} parent=1 // loop_header_branch
      %19 = sbr.rel (%p17) target = $region8
    $region5: #{tpu_custom_call.1} parent=1 // loop_body
      %s21 = ssub.s32 %s16, 1
      %s22 = ssub.s32 %s16, 2
      %s29 = sadd.s32 1, %s24
      %p30 = scmp.ge.s32.totalorder %s29, 5
      %s31 = scalar_select %p30, 0, %s29
      %s32 = sadd.s32 1, %s23
      %s33 = scalar_select %p30, %s32, %s23
      %p34 = scmp.ge.s32.totalorder %s33, 1
      %s35 = scalar_select %p34, 0, %s33
      %s36 = smul.u32 %s23, 5
      %s37 = sadd.s32 %s36, %s24
      %s38 = smul.u32 %s35, 5
      %s39 = sadd.s32 %s38, %s31
      %s40 = ssub.s32 %s37, %s39
      %p41 = scmp.eq.s32.totalorder %s40, 0
      %s43 = sadd.s32 %s42, 1
      %s44 = scalar_select %p41, %s42, %s43
      %p47 = pneg %p41
      %p48 = scmp.eq.s32.totalorder %s16, 4
      %p49 = por %p47, %p48
      %p50 = scmp.ne.s32.totalorder %s42, %s45
      %p51 = scmp.eq.s32.totalorder %s16, 0
      %p52 = por %p50, %p51
      %p53 = scmp.ne.s32.totalorder %s42, %s45
      %p54 = scmp.eq.s32.totalorder %s21, 4
      %p55 = por %p53, %p54
      %p56 = scmp.ne.s32.totalorder %s45, %s46
      %p57 = scmp.eq.s32.totalorder %s21, 0
      %p58 = por %p56, %p57
      %p59 = scmp.ne.s32.totalorder %s45, %s46
      %p60 = scmp.eq.s32.totalorder %s22, 4
      %p61 = por %p59, %p60
      %p63 = scmp.ne.s32.totalorder %s46, %s62
      %p64 = scmp.eq.s32.totalorder %s22, 0
      %p65 = por %p63, %p64
      %s67 = sadd.s32 %s66, 1
      %p70 = scmp.eq.s32.totalorder %s16, 4
      %p71 = scmp.ne.s32.totalorder %s66, %s68
      %p72 = scmp.eq.s32.totalorder %s16, 0
      %p73 = por %p71, %p72
      %p74 = scmp.ne.s32.totalorder %s66, %s68
      %p75 = scmp.eq.s32.totalorder %s21, 4
      %p76 = por %p74, %p75
      %p77 = scmp.ne.s32.totalorder %s68, %s69
      %p78 = scmp.eq.s32.totalorder %s21, 0
      %p79 = por %p77, %p78
      %p80 = scmp.ne.s32.totalorder %s68, %s69
      %p81 = scmp.eq.s32.totalorder %s22, 4
      %p82 = por %p80, %p81
      %p84 = scmp.ne.s32.totalorder %s69, %s83
      %p85 = scmp.eq.s32.totalorder %s22, 0
      %p86 = por %p84, %p85
      %s88 = sadd.s32 %s87, 1
      %p91 = scmp.eq.s32.totalorder %s16, 4
      %p92 = scmp.ne.s32.totalorder %s87, %s89
      %p93 = scmp.eq.s32.totalorder %s16, 0
      %p94 = por %p92, %p93
      %p95 = scmp.ne.s32.totalorder %s87, %s89
      %p96 = scmp.eq.s32.totalorder %s21, 4
      %p97 = por %p95, %p96
      %p98 = scmp.ne.s32.totalorder %s89, %s90
      %p99 = scmp.eq.s32.totalorder %s21, 0
      %p100 = por %p98, %p99
      %p101 = scmp.ne.s32.totalorder %s89, %s90
      %p102 = scmp.eq.s32.totalorder %s22, 4
      %p103 = por %p101, %p102
      %p105 = scmp.ne.s32.totalorder %s90, %s104
      %p106 = scmp.eq.s32.totalorder %s22, 0
      %p107 = por %p105, %p106
      %s109 = sadd.s32 %s108, 1
      %p112 = scmp.eq.s32.totalorder %s16, 4
      %p113 = scmp.ne.s32.totalorder %s108, %s110
      %p114 = scmp.eq.s32.totalorder %s16, 0
      %p115 = por %p113, %p114
      %p116 = scmp.ne.s32.totalorder %s108, %s110
      %p117 = scmp.eq.s32.totalorder %s21, 4
      %p118 = por %p116, %p117
      %p119 = scmp.ne.s32.totalorder %s110, %s111
      %p120 = scmp.eq.s32.totalorder %s21, 0
      %p121 = por %p119, %p120
      %p122 = scmp.ne.s32.totalorder %s110, %s111
      %p123 = scmp.eq.s32.totalorder %s22, 4
      %p124 = por %p122, %p123
      %p126 = scmp.ne.s32.totalorder %s111, %s125
      %p127 = scmp.eq.s32.totalorder %s22, 0
      %p128 = por %p126, %p127
      %s129 = ssub.s32 %s23, %s35
      %p130 = scmp.eq.s32.totalorder %s129, 0
      %s132 = sadd.s32 %s131, 1
      %s133 = scalar_select %p130, %s131, %s132
      %p136 = pneg %p130
      %p137 = scmp.eq.s32.totalorder %s16, 4
      %p138 = por %p136, %p137
      %p139 = scmp.ne.s32.totalorder %s131, %s134
      %p140 = scmp.eq.s32.totalorder %s16, 0
      %p141 = por %p139, %p140
      %p142 = scmp.ne.s32.totalorder %s131, %s134
      %p143 = scmp.eq.s32.totalorder %s21, 4
      %p144 = por %p142, %p143
      %p145 = scmp.ne.s32.totalorder %s134, %s135
      %p146 = scmp.eq.s32.totalorder %s21, 0
      %p147 = por %p145, %p146
      %p148 = scmp.ne.s32.totalorder %s134, %s135
      %p149 = scmp.eq.s32.totalorder %s22, 4
      %p150 = por %p148, %p149
      %p152 = scmp.ne.s32.totalorder %s135, %s151
      %p153 = scmp.eq.s32.totalorder %s22, 0
      %p154 = por %p152, %p153
      %p155 = scmp.le.s32.totalorder 1, %s16
      %p156 = scmp.lt.s32.totalorder %s16, 6
      %p157 = pnand %p155, %p156
      %p158 = pneg %p157
      // Predicated region
      $region9: #{tpu_custom_call.1} parent=5 // pred_check
        _
      $region10: #{tpu_custom_call.1} parent=5 // pred_check_branch
        %160 = sbr.rel (%p157) target = $region12
      $region11: #{tpu_custom_call.1} parent=5 // pred_region
        %s161 = ssub.s32 %s16, 1
        // Predicated region
        $region13: #{tpu_custom_call.1} parent=11 // pred_check
          %p162 = pneg %p79
        $region14: #{tpu_custom_call.1} parent=11 // pred_check_branch
          %164 = sbr.rel (%p162) target = $region16
        $region15: #{tpu_custom_call.1} parent=11 // pred_region
          %s166 = ssub.s32 2048, 2048
          %167 = vsyncadd [#allocation7], %s166
          %s168 = sshll.u32 [#allocation6], 4
          %s169 = int_to_ptr.vmem [resolvable:$true] %s168
          %174 = dma.hbm_to_vmem [thread:$0]  %s1, 2048, %s169, [#allocation7], 64, 64, 4
        $region16: #{tpu_custom_call.1} parent=11 // pred_fallthru
          _
        // Predicated region
        $region17: #{tpu_custom_call.1} parent=11 // pred_check
          %p175 = pneg %p100
        $region18: #{tpu_custom_call.1} parent=11 // pred_check_branch
          %177 = sbr.rel (%p175) target = $region20
        $region19: #{tpu_custom_call.1} parent=11 // pred_region
          _
        $region20: #{tpu_custom_call.1} parent=11 // pred_fallthru
          _
        // Predicated region
        $region21: #{tpu_custom_call.1} parent=11 // pred_check
          %p178 = pneg %p121
        $region22: #{tpu_custom_call.1} parent=11 // pred_check_branch
          %180 = sbr.rel (%p178) target = $region24
        $region23: #{tpu_custom_call.1} parent=11 // pred_region
          _
        $region24: #{tpu_custom_call.1} parent=11 // pred_fallthru
          _
      $region12: #{tpu_custom_call.1} parent=5 // pred_fallthru
        _
      %p181 = scmp.lt.s32.totalorder %s16, 5
      // Predicated region
      $region25: #{tpu_custom_call.1} parent=5 // pred_check
        %p182 = pneg %p181
      $region26: #{tpu_custom_call.1} parent=5 // pred_check_branch
        %184 = sbr.rel (%p182) target = $region28
      $region27: #{tpu_custom_call.1} parent=5 // pred_region
        // Predicated region
        $region29: #{tpu_custom_call.1} parent=27 // pred_check
          %p185 = pneg %p52
        $region30: #{tpu_custom_call.1} parent=27 // pred_check_branch
          %187 = sbr.rel (%p185) target = $region32
        $region31: #{tpu_custom_call.1} parent=27 // pred_region
          %s188 = sand.u32 %s42, 1
          %s189 = scalar_lea.sflag [#allocation4], %s188
          %s190 = sand.u32 %s42, 1
          %s191 = smul.addr %s190, 128
          %s192 = scalar_lea.vmem [#allocation3], %s191
          %s193 = smul.u32 %s23, 5
          %s194 = sadd.s32 %s193, %s24
          %s195 = smul.u32 16, %s194
          %s197 = ssub.s32 2048, 2048
          %198 = vsyncadd %s189, %s197
          %s199 = smul.addr %s195, 2
          %s200 = smul.addr %s199, 64
          %s201 = scalar_lea.hbm %s0, %s200
          %s202 = sshll.u32 %s192, 4
          %s203 = int_to_ptr.vmem [resolvable:$true] %s202
          %208 = dma.hbm_to_vmem [thread:$0]  %s201, 2048, %s203, %s189, 128, 128, 8
        $region32: #{tpu_custom_call.1} parent=27 // pred_fallthru
          _
      $region28: #{tpu_custom_call.1} parent=5 // pred_fallthru
        _
      %p209 = scmp.le.s32.totalorder 1, %s16
      %p210 = scmp.lt.s32.totalorder %s16, 6
      %p211 = pnand %p209, %p210
      %p212 = pneg %p211
      // Predicated region
      $region33: #{tpu_custom_call.1} parent=5 // pred_check
        _
      $region34: #{tpu_custom_call.1} parent=5 // pred_check_branch
        %214 = sbr.rel (%p211) target = $region36
      $region35: #{tpu_custom_call.1} parent=5 // pred_region
        %s215 = ssub.s32 %s16, 1
        %s216 = sand.u32 %s45, 1
        %s217 = scalar_lea.sflag [#allocation4], %s216
        %s218 = sand.u32 %s45, 1
        %s219 = smul.addr %s218, 128
        %s220 = scalar_lea.vmem [#allocation3], %s219
        // Predicated region
        $region37: #{tpu_custom_call.1} parent=35 // pred_check
          %p221 = pneg %p58
        $region38: #{tpu_custom_call.1} parent=35 // pred_check_branch
          %223 = sbr.rel (%p221) target = $region40
        $region39: #{tpu_custom_call.1} parent=35 // pred_region
          %224 = dma.done %s217, 2048
        $region40: #{tpu_custom_call.1} parent=35 // pred_fallthru
          _
        // Predicated region
        $region41: #{tpu_custom_call.1} parent=35 // pred_check
          %p225 = pneg %p79
        $region42: #{tpu_custom_call.1} parent=35 // pred_check_branch
          %227 = sbr.rel (%p225) target = $region44
        $region43: #{tpu_custom_call.1} parent=35 // pred_region
          %228 = dma.done [#allocation7], 2048
        $region44: #{tpu_custom_call.1} parent=35 // pred_fallthru
          _
        %s229 = sand.u32 %s45, 1
        %s230 = scalar_lea.sflag [#allocation4], %s229
        %s231 = sand.u32 %s45, 1
        %s232 = smul.addr %s231, 128
        %s233 = scalar_lea.vmem [#allocation3], %s232
        %p234 = pneg %p58
        %p235 = pneg %p55
        %p236 = pneg %p79
        %p237 = pneg %p76
        %p238 = pneg %p100
        %p239 = pneg %p97
        %p240 = pneg %p121
        %p241 = pneg %p118
        %p242 = pneg %p147
        %p243 = pneg %p144
        %s244 = smul.u32 %s25, 5
        %s245 = sadd.s32 %s244, %s26
        %s246 = smul.u32 16, %s245
        %p248 = scmp.eq.s32.totalorder %s26, 0
        // Predicated region
        $region45: #{tpu_custom_call.1} parent=35 // pred_check
          %p249 = pneg %p248
        $region46: #{tpu_custom_call.1} parent=35 // pred_check_branch
          %251 = sbr.rel (%p249) target = $region48
        $region47: #{tpu_custom_call.1} parent=35 // pred_region
          %252 = vst [vmem:[#allocation8] sm:$0xff] 0.0
          %253 = vst [vmem:[#allocation8 + $0x8] sm:$0xff] 0.0
        $region48: #{tpu_custom_call.1} parent=35 // pred_fallthru
          _
        %v254 = vld [vmem:[%s220] sm:$0xff]
        %v255 = vld [vmem:[%s220 + $0x8] sm:$0xff]
        %v256 = vld [vmem:[%s220 + $0x10] sm:$0xff]
        %v257 = vld [vmem:[%s220 + $0x18] sm:$0xff]
        %v258 = vld [vmem:[%s220 + $0x20] sm:$0xff]
        %v259 = vld [vmem:[%s220 + $0x28] sm:$0xff]
        %v260 = vld [vmem:[%s220 + $0x30] sm:$0xff]
        %v261 = vld [vmem:[%s220 + $0x38] sm:$0xff]
        %v262 = vld [vmem:[%s220 + $0x40] sm:$0xff]
        %v263 = vld [vmem:[%s220 + $0x48] sm:$0xff]
        %v264 = vld [vmem:[%s220 + $0x50] sm:$0xff]
        %v265 = vld [vmem:[%s220 + $0x58] sm:$0xff]
        %v266 = vld [vmem:[%s220 + $0x60] sm:$0xff]
        %v267 = vld [vmem:[%s220 + $0x68] sm:$0xff]
        %v268 = vld [vmem:[%s220 + $0x70] sm:$0xff]
        %v269 = vld [vmem:[%s220 + $0x78] sm:$0xff]
        %v270 = vld [vmem:[#allocation6] sm:$0xf]
        %v271 = vld [vmem:[#allocation6 + $0x4] sm:$0xf]
        %v272 = vld [vmem:[#allocation6 + $0x8] sm:$0xf]
        %v273 = vld [vmem:[#allocation6 + $0xc] sm:$0xf]
        %v274 = vld [vmem:[#allocation6 + $0x10] sm:$0xf]
        %v275 = vld [vmem:[#allocation6 + $0x14] sm:$0xf]
        %v276 = vld [vmem:[#allocation6 + $0x18] sm:$0xf]
        %v277 = vld [vmem:[#allocation6 + $0x1c] sm:$0xf]
        %v278 = vld [vmem:[#allocation6 + $0x20] sm:$0xf]
        %v279 = vld [vmem:[#allocation6 + $0x24] sm:$0xf]
        %v280 = vld [vmem:[#allocation6 + $0x28] sm:$0xf]
        %v281 = vld [vmem:[#allocation6 + $0x2c] sm:$0xf]
        %v282 = vld [vmem:[#allocation6 + $0x30] sm:$0xf]
        %v283 = vld [vmem:[#allocation6 + $0x34] sm:$0xf]
        %v284 = vld [vmem:[#allocation6 + $0x38] sm:$0xf]
        %v285 = vld [vmem:[#allocation6 + $0x3c] sm:$0xf]
        %v286 = vld [vmem:[#allocation6 + $0x40] sm:$0xf]
        %v287 = vld [vmem:[#allocation6 + $0x44] sm:$0xf]
        %v288 = vld [vmem:[#allocation6 + $0x48] sm:$0xf]
        %v289 = vld [vmem:[#allocation6 + $0x4c] sm:$0xf]
        %v290 = vld [vmem:[#allocation6 + $0x50] sm:$0xf]
        %v291 = vld [vmem:[#allocation6 + $0x54] sm:$0xf]
        %v292 = vld [vmem:[#allocation6 + $0x58] sm:$0xf]
        %v293 = vld [vmem:[#allocation6 + $0x5c] sm:$0xf]
        %v294 = vld [vmem:[#allocation6 + $0x60] sm:$0xf]
        %v295 = vld [vmem:[#allocation6 + $0x64] sm:$0xf]
        %v296 = vld [vmem:[#allocation6 + $0x68] sm:$0xf]
        %v297 = vld [vmem:[#allocation6 + $0x6c] sm:$0xf]
        %v298 = vld [vmem:[#allocation6 + $0x70] sm:$0xf]
        %v299 = vld [vmem:[#allocation6 + $0x74] sm:$0xf]
        %v300 = vld [vmem:[#allocation6 + $0x78] sm:$0xf]
        %v301 = vld [vmem:[#allocation6 + $0x7c] sm:$0xf]
        %v318 = vunpack.c.l.b16 %v254
        %v319 = vunpack.c.h.b16 %v254
        %v320 = vunpack.c.l.b16 %v255
        %v321 = vunpack.c.h.b16 %v255
        %v322 = vunpack.c.l.b16 %v256
        %v323 = vunpack.c.h.b16 %v256
        %v324 = vunpack.c.l.b16 %v257
        %v325 = vunpack.c.h.b16 %v257
        %v326 = vunpack.c.l.b16 %v258
        %v327 = vunpack.c.h.b16 %v258
        %v328 = vunpack.c.l.b16 %v259
        %v329 = vunpack.c.h.b16 %v259
        %v330 = vunpack.c.l.b16 %v260
        %v331 = vunpack.c.h.b16 %v260
        %v332 = vunpack.c.l.b16 %v261
        %v333 = vunpack.c.h.b16 %v261
        %v334 = vunpack.c.l.b16 %v262
        %v335 = vunpack.c.h.b16 %v262
        %v336 = vunpack.c.l.b16 %v263
        %v337 = vunpack.c.h.b16 %v263
        %v338 = vunpack.c.l.b16 %v264
        %v339 = vunpack.c.h.b16 %v264
        %v340 = vunpack.c.l.b16 %v265
        %v341 = vunpack.c.h.b16 %v265
        %v342 = vunpack.c.l.b16 %v266
        %v343 = vunpack.c.h.b16 %v266
        %v344 = vunpack.c.l.b16 %v267
        %v345 = vunpack.c.h.b16 %v267
        %v346 = vunpack.c.l.b16 %v268
        %v347 = vunpack.c.h.b16 %v268
        %v348 = vunpack.c.l.b16 %v269
        %v349 = vunpack.c.h.b16 %v269
        %v350 = vpack.c.b16 %v320, %v318
        %v351 = vpack.c.b16 %v321, %v319
        %v352 = vpack.c.b16 %v324, %v322
        %v353 = vpack.c.b16 %v325, %v323
        %v354 = vpack.c.b16 %v328, %v326
        %v355 = vpack.c.b16 %v329, %v327
        %v356 = vpack.c.b16 %v332, %v330
        %v357 = vpack.c.b16 %v333, %v331
        %v358 = vpack.c.b16 %v336, %v334
        %v359 = vpack.c.b16 %v337, %v335
        %v360 = vpack.c.b16 %v340, %v338
        %v361 = vpack.c.b16 %v341, %v339
        %v362 = vpack.c.b16 %v344, %v342
        %v363 = vpack.c.b16 %v345, %v343
        %v364 = vpack.c.b16 %v348, %v346
        %v365 = vpack.c.b16 %v349, %v347
        %v414 = vunpack.c.l.b16 %v270
        %v415 = vunpack.c.l.b16 %v271
        %v416 = vunpack.c.l.b16 %v272
        %v417 = vunpack.c.l.b16 %v273
        %v418 = vunpack.c.l.b16 %v274
        %v419 = vunpack.c.l.b16 %v275
        %v420 = vunpack.c.l.b16 %v276
        %v421 = vunpack.c.l.b16 %v277
        %v422 = vunpack.c.l.b16 %v278
        %v423 = vunpack.c.l.b16 %v279
        %v424 = vunpack.c.l.b16 %v280
        %v425 = vunpack.c.l.b16 %v281
        %v426 = vunpack.c.l.b16 %v282
        %v427 = vunpack.c.l.b16 %v283
        %v428 = vunpack.c.l.b16 %v284
        %v429 = vunpack.c.l.b16 %v285
        %v430 = vunpack.c.l.b16 %v286
        %v431 = vunpack.c.l.b16 %v287
        %v432 = vunpack.c.l.b16 %v288
        %v433 = vunpack.c.l.b16 %v289
        %v434 = vunpack.c.l.b16 %v290
        %v435 = vunpack.c.l.b16 %v291
        %v436 = vunpack.c.l.b16 %v292
        %v437 = vunpack.c.l.b16 %v293
        %v438 = vunpack.c.l.b16 %v294
        %v439 = vunpack.c.l.b16 %v295
        %v440 = vunpack.c.l.b16 %v296
        %v441 = vunpack.c.l.b16 %v297
        %v442 = vunpack.c.l.b16 %v298
        %v443 = vunpack.c.l.b16 %v299
        %v444 = vunpack.c.l.b16 %v300
        %v445 = vunpack.c.l.b16 %v301
        %v446 = vpack.c.b16 %v415, %v414
        %v447 = vpack.c.b16 %v417, %v416
        %v448 = vpack.c.b16 %v419, %v418
        %v449 = vpack.c.b16 %v421, %v420
        %v450 = vpack.c.b16 %v423, %v422
        %v451 = vpack.c.b16 %v425, %v424
        %v452 = vpack.c.b16 %v427, %v426
        %v453 = vpack.c.b16 %v429, %v428
        %v454 = vpack.c.b16 %v431, %v430
        %v455 = vpack.c.b16 %v433, %v432
        %v456 = vpack.c.b16 %v435, %v434
        %v457 = vpack.c.b16 %v437, %v436
        %v458 = vpack.c.b16 %v439, %v438
        %v459 = vpack.c.b16 %v441, %v440
        %v460 = vpack.c.b16 %v443, %v442
        %v461 = vpack.c.b16 %v445, %v444
        %478 = vmatprep.subr.bf16.mxu0 0
        %479 = vmatpush1.bf16.msra.mxu0 %v453
        %480 = vmatprep.subr.bf16.mxu0 0
        %481 = vmatpush1.bf16.msra.mxu0 %v452
        %482 = vmatprep.subr.bf16.mxu0 0
        %483 = vmatpush1.bf16.msra.mxu0 %v451
        %484 = vmatprep.subr.bf16.mxu0 0
        %485 = vmatpush1.bf16.msra.mxu0 %v450
        %486 = vmatprep.subr.bf16.mxu0 0
        %487 = vmatpush1.bf16.msra.mxu0 %v449
        %488 = vmatprep.subr.bf16.mxu0 0
        %489 = vmatpush1.bf16.msra.mxu0 %v448
        %490 = vmatprep.subr.bf16.mxu0 0
        %491 = vmatpush1.bf16.msra.mxu0 %v447
        %492 = vmatprep.subr.bf16.mxu0 0
        %493 = vmatpush1.bf16.msra.mxu0 %v446
        %494 = vmatprep.subr.bf16.mxu0 0
        %495 = vmatpush2.bf16.msra.mxu0 %v461
        %496 = vmatprep.subr.bf16.mxu0 0
        %497 = vmatpush2.bf16.msra.mxu0 %v460
        %498 = vmatprep.subr.bf16.mxu0 0
        %499 = vmatpush2.bf16.msra.mxu0 %v459
        %500 = vmatprep.subr.bf16.mxu0 0
        %501 = vmatpush2.bf16.msra.mxu0 %v458
        %502 = vmatprep.subr.bf16.mxu0 0
        %503 = vmatpush2.bf16.msra.mxu0 %v457
        %504 = vmatprep.subr.bf16.mxu0 0
        %505 = vmatpush2.bf16.msra.mxu0 %v456
        %506 = vmatprep.subr.bf16.mxu0 0
        %507 = vmatpush2.bf16.msra.mxu0 %v455
        %508 = vmatprep.subr.bf16.mxu0 0
        %509 = vmatpush2.bf16.msra.mxu0 %v454
        %510 = vmatprep.mubr.bf16.mxu0 %v351
        %511 = vmatmul.mubr.bf16.gmra.mxu0 %v350
        %v512 = vpop.f32.mrf.mxu0
        %v513 = vadd.f32 0.0, %v512
        %v514 = vpop.f32.mrf.mxu0
        %v515 = vpop.f32.mrf.mxu0
        %v516 = vadd.f32 0.0, %v515
        %v517 = vpop.f32.mrf.mxu0
        %518 = vmatprep.mubr.bf16.mxu0 %v353
        %519 = vmatmul.mubr.bf16.gmra.mxu0 %v352
        %v520 = vpop.f32.mrf.mxu0
        %v521 = vadd.f32 0.0, %v520
        %v522 = vpop.f32.mrf.mxu0
        %v523 = vpop.f32.mrf.mxu0
        %v524 = vadd.f32 0.0, %v523
        %v525 = vpop.f32.mrf.mxu0
        %526 = vmatprep.mubr.bf16.mxu0 %v355
        %527 = vmatmul.mubr.bf16.gmra.mxu0 %v354
        %v528 = vpop.f32.mrf.mxu0
        %v529 = vadd.f32 0.0, %v528
        %v530 = vpop.f32.mrf.mxu0
        %v531 = vpop.f32.mrf.mxu0
        %v532 = vadd.f32 0.0, %v531
        %v533 = vpop.f32.mrf.mxu0
        %534 = vmatprep.mubr.bf16.mxu0 %v357
        %535 = vmatmul.mubr.bf16.gmra.mxu0 %v356
        %v536 = vpop.f32.mrf.mxu0
        %v537 = vadd.f32 0.0, %v536
        %v538 = vpop.f32.mrf.mxu0
        %v539 = vpop.f32.mrf.mxu0
        %v540 = vadd.f32 0.0, %v539
        %v541 = vpop.f32.mrf.mxu0
        %542 = vmatprep.mubr.bf16.mxu0 %v359
        %543 = vmatmul.mubr.bf16.gmra.mxu0 %v358
        %v544 = vpop.f32.mrf.mxu0
        %v545 = vadd.f32 0.0, %v544
        %v546 = vpop.f32.mrf.mxu0
        %v547 = vpop.f32.mrf.mxu0
        %v548 = vadd.f32 0.0, %v547
        %v549 = vpop.f32.mrf.mxu0
        %550 = vmatprep.mubr.bf16.mxu0 %v361
        %551 = vmatmul.mubr.bf16.gmra.mxu0 %v360
        %v552 = vpop.f32.mrf.mxu0
        %v553 = vadd.f32 0.0, %v552
        %v554 = vpop.f32.mrf.mxu0
        %v555 = vpop.f32.mrf.mxu0
        %v556 = vadd.f32 0.0, %v555
        %v557 = vpop.f32.mrf.mxu0
        %558 = vmatprep.mubr.bf16.mxu0 %v363
        %559 = vmatmul.mubr.bf16.gmra.mxu0 %v362
        %v560 = vpop.f32.mrf.mxu0
        %v561 = vadd.f32 0.0, %v560
        %v562 = vpop.f32.mrf.mxu0
        %v563 = vpop.f32.mrf.mxu0
        %v564 = vadd.f32 0.0, %v563
        %v565 = vpop.f32.mrf.mxu0
        %566 = vmatprep.mubr.bf16.mxu0 %v365
        %567 = vmatmul.mubr.bf16.gmra.mxu0 %v364
        %v568 = vpop.f32.mrf.mxu0
        %v569 = vadd.f32 0.0, %v568
        %v570 = vpop.f32.mrf.mxu0
        %v571 = vpop.f32.mrf.mxu0
        %v572 = vadd.f32 0.0, %v571
        %v573 = vpop.f32.mrf.mxu0
        %574 = vdwg.mxu0
        %v575 = vld [vmem:[%s2] sm:$0x1]
        %v577 = vlaneseq
        %v578 = vshrl.u32 %v577, 7
        %v579 = vsub.s32 0, %v578
        %v580 = vrot.slane %v575, %v579
        %v582 = vsub.f32 %v513, %v580
        %v583 = vsub.f32 %v516, %v580
        %v584 = vsub.f32 %v521, %v580
        %v585 = vsub.f32 %v524, %v580
        %v586 = vsub.f32 %v529, %v580
        %v587 = vsub.f32 %v532, %v580
        %v588 = vsub.f32 %v537, %v580
        %v589 = vsub.f32 %v540, %v580
        %v590 = vsub.f32 %v545, %v580
        %v591 = vsub.f32 %v548, %v580
        %v592 = vsub.f32 %v553, %v580
        %v593 = vsub.f32 %v556, %v580
        %v594 = vsub.f32 %v561, %v580
        %v595 = vsub.f32 %v564, %v580
        %v596 = vsub.f32 %v569, %v580
        %v597 = vsub.f32 %v572, %v580
        %v598 = vmul.f32 %v582, %v582
        %v599 = vmul.f32 %v583, %v583
        %v600 = vmul.f32 %v584, %v584
        %v601 = vmul.f32 %v585, %v585
        %v602 = vmul.f32 %v586, %v586
        %v603 = vmul.f32 %v587, %v587
        %v604 = vmul.f32 %v588, %v588
        %v605 = vmul.f32 %v589, %v589
        %v606 = vmul.f32 %v590, %v590
        %v607 = vmul.f32 %v591, %v591
        %v608 = vmul.f32 %v592, %v592
        %v609 = vmul.f32 %v593, %v593
        %v610 = vmul.f32 %v594, %v594
        %v611 = vmul.f32 %v595, %v595
        %v612 = vmul.f32 %v596, %v596
        %v613 = vmul.f32 %v597, %v597
        %614 = vadd.xlane.f32.xlu0 %v598
        %v615 = vpop.xlane.xlu0 %614
        %616 = vadd.xlane.f32.xlu0 %v599
        %v617 = vpop.xlane.xlu0 %616
        %618 = vadd.xlane.f32.xlu0 %v600
        %v619 = vpop.xlane.xlu0 %618
        %620 = vadd.xlane.f32.xlu0 %v601
        %v621 = vpop.xlane.xlu0 %620
        %622 = vadd.xlane.f32.xlu0 %v602
        %v623 = vpop.xlane.xlu0 %622
        %624 = vadd.xlane.f32.xlu0 %v603
        %v625 = vpop.xlane.xlu0 %624
        %626 = vadd.xlane.f32.xlu0 %v604
        %v627 = vpop.xlane.xlu0 %626
        %628 = vadd.xlane.f32.xlu0 %v605
        %v629 = vpop.xlane.xlu0 %628
        %630 = vadd.xlane.f32.xlu0 %v606
        %v631 = vpop.xlane.xlu0 %630
        %632 = vadd.xlane.f32.xlu0 %v607
        %v633 = vpop.xlane.xlu0 %632
        %634 = vadd.xlane.f32.xlu0 %v608
        %v635 = vpop.xlane.xlu0 %634
        %636 = vadd.xlane.f32.xlu0 %v609
        %v637 = vpop.xlane.xlu0 %636
        %638 = vadd.xlane.f32.xlu0 %v610
        %v639 = vpop.xlane.xlu0 %638
        %640 = vadd.xlane.f32.xlu0 %v611
        %v641 = vpop.xlane.xlu0 %640
        %642 = vadd.xlane.f32.xlu0 %v612
        %v643 = vpop.xlane.xlu0 %642
        %644 = vadd.xlane.f32.xlu0 %v613
        %v645 = vpop.xlane.xlu0 %644
        %v646 = vrsqrt.pop %v615
        %v647 = vmul.f32 %v615, %v646
        %vm648 = vcmp.eq.f32.partialorder %v615, inf
        %v649 = vsel %vm648, %v615, %v647
        %vm650 = vcmp.eq.f32.partialorder %v615, 0.0
        %v651 = vand.u32 %v615, 2147483648
        %v652 = vsel %vm650, %v651, %v649
        %v653 = vrsqrt.pop %v617
        %v654 = vmul.f32 %v617, %v653
        %vm655 = vcmp.eq.f32.partialorder %v617, inf
        %v656 = vsel %vm655, %v617, %v654
        %vm657 = vcmp.eq.f32.partialorder %v617, 0.0
        %v658 = vand.u32 %v617, 2147483648
        %v659 = vsel %vm657, %v658, %v656
        %v660 = vrsqrt.pop %v619
        %v661 = vmul.f32 %v619, %v660
        %vm662 = vcmp.eq.f32.partialorder %v619, inf
        %v663 = vsel %vm662, %v619, %v661
        %vm664 = vcmp.eq.f32.partialorder %v619, 0.0
        %v665 = vand.u32 %v619, 2147483648
        %v666 = vsel %vm664, %v665, %v663
        %v667 = vrsqrt.pop %v621
        %v668 = vmul.f32 %v621, %v667
        %vm669 = vcmp.eq.f32.partialorder %v621, inf
        %v670 = vsel %vm669, %v621, %v668
        %vm671 = vcmp.eq.f32.partialorder %v621, 0.0
        %v672 = vand.u32 %v621, 2147483648
        %v673 = vsel %vm671, %v672, %v670
        %v674 = vrsqrt.pop %v623
        %v675 = vmul.f32 %v623, %v674
        %vm676 = vcmp.eq.f32.partialorder %v623, inf
        %v677 = vsel %vm676, %v623, %v675
        %vm678 = vcmp.eq.f32.partialorder %v623, 0.0
        %v679 = vand.u32 %v623, 2147483648
        %v680 = vsel %vm678, %v679, %v677
        %v681 = vrsqrt.pop %v625
        %v682 = vmul.f32 %v625, %v681
        %vm683 = vcmp.eq.f32.partialorder %v625, inf
        %v684 = vsel %vm683, %v625, %v682
        %vm685 = vcmp.eq.f32.partialorder %v625, 0.0
        %v686 = vand.u32 %v625, 2147483648
        %v687 = vsel %vm685, %v686, %v684
        %v688 = vrsqrt.pop %v627
        %v689 = vmul.f32 %v627, %v688
        %vm690 = vcmp.eq.f32.partialorder %v627, inf
        %v691 = vsel %vm690, %v627, %v689
        %vm692 = vcmp.eq.f32.partialorder %v627, 0.0
        %v693 = vand.u32 %v627, 2147483648
        %v694 = vsel %vm692, %v693, %v691
        %v695 = vrsqrt.pop %v629
        %v696 = vmul.f32 %v629, %v695
        %vm697 = vcmp.eq.f32.partialorder %v629, inf
        %v698 = vsel %vm697, %v629, %v696
        %vm699 = vcmp.eq.f32.partialorder %v629, 0.0
        %v700 = vand.u32 %v629, 2147483648
        %v701 = vsel %vm699, %v700, %v698
        %v702 = vrsqrt.pop %v631
        %v703 = vmul.f32 %v631, %v702
        %vm704 = vcmp.eq.f32.partialorder %v631, inf
        %v705 = vsel %vm704, %v631, %v703
        %vm706 = vcmp.eq.f32.partialorder %v631, 0.0
        %v707 = vand.u32 %v631, 2147483648
        %v708 = vsel %vm706, %v707, %v705
        %v709 = vrsqrt.pop %v633
        %v710 = vmul.f32 %v633, %v709
        %vm711 = vcmp.eq.f32.partialorder %v633, inf
        %v712 = vsel %vm711, %v633, %v710
        %vm713 = vcmp.eq.f32.partialorder %v633, 0.0
        %v714 = vand.u32 %v633, 2147483648
        %v715 = vsel %vm713, %v714, %v712
        %v716 = vrsqrt.pop %v635
        %v717 = vmul.f32 %v635, %v716
        %vm718 = vcmp.eq.f32.partialorder %v635, inf
        %v719 = vsel %vm718, %v635, %v717
        %vm720 = vcmp.eq.f32.partialorder %v635, 0.0
        %v721 = vand.u32 %v635, 2147483648
        %v722 = vsel %vm720, %v721, %v719
        %v723 = vrsqrt.pop %v637
        %v724 = vmul.f32 %v637, %v723
        %vm725 = vcmp.eq.f32.partialorder %v637, inf
        %v726 = vsel %vm725, %v637, %v724
        %vm727 = vcmp.eq.f32.partialorder %v637, 0.0
        %v728 = vand.u32 %v637, 2147483648
        %v729 = vsel %vm727, %v728, %v726
        %v730 = vrsqrt.pop %v639
        %v731 = vmul.f32 %v639, %v730
        %vm732 = vcmp.eq.f32.partialorder %v639, inf
        %v733 = vsel %vm732, %v639, %v731
        %vm734 = vcmp.eq.f32.partialorder %v639, 0.0
        %v735 = vand.u32 %v639, 2147483648
        %v736 = vsel %vm734, %v735, %v733
        %v737 = vrsqrt.pop %v641
        %v738 = vmul.f32 %v641, %v737
        %vm739 = vcmp.eq.f32.partialorder %v641, inf
        %v740 = vsel %vm739, %v641, %v738
        %vm741 = vcmp.eq.f32.partialorder %v641, 0.0
        %v742 = vand.u32 %v641, 2147483648
        %v743 = vsel %vm741, %v742, %v740
        %v744 = vrsqrt.pop %v643
        %v745 = vmul.f32 %v643, %v744
        %vm746 = vcmp.eq.f32.partialorder %v643, inf
        %v747 = vsel %vm746, %v643, %v745
        %vm748 = vcmp.eq.f32.partialorder %v643, 0.0
        %v749 = vand.u32 %v643, 2147483648
        %v750 = vsel %vm748, %v749, %v747
        %v751 = vrsqrt.pop %v645
        %v752 = vmul.f32 %v645, %v751
        %vm753 = vcmp.eq.f32.partialorder %v645, inf
        %v754 = vsel %vm753, %v645, %v752
        %vm755 = vcmp.eq.f32.partialorder %v645, 0.0
        %v756 = vand.u32 %v645, 2147483648
        %v757 = vsel %vm755, %v756, %v754
        %s758 = sld [smem:[#allocation2]]
        %v759 = vstv %s758
        %v760 = vsub.f32 %v652, %v759
        %v761 = vsub.f32 %v659, %v759
        %v762 = vsub.f32 %v666, %v759
        %v763 = vsub.f32 %v673, %v759
        %v764 = vsub.f32 %v680, %v759
        %v765 = vsub.f32 %v687, %v759
        %v766 = vsub.f32 %v694, %v759
        %v767 = vsub.f32 %v701, %v759
        %v768 = vsub.f32 %v708, %v759
        %v769 = vsub.f32 %v715, %v759
        %v770 = vsub.f32 %v722, %v759
        %v771 = vsub.f32 %v729, %v759
        %v772 = vsub.f32 %v736, %v759
        %v773 = vsub.f32 %v743, %v759
        %v774 = vsub.f32 %v750, %v759
        %v775 = vsub.f32 %v757, %v759
        %v776 = vmax.f32 %v760, 0.0
        %v777 = vmax.f32 %v761, 0.0
        %v778 = vmax.f32 %v762, 0.0
        %v779 = vmax.f32 %v763, 0.0
        %v780 = vmax.f32 %v764, 0.0
        %v781 = vmax.f32 %v765, 0.0
        %v782 = vmax.f32 %v766, 0.0
        %v783 = vmax.f32 %v767, 0.0
        %v784 = vmax.f32 %v768, 0.0
        %v785 = vmax.f32 %v769, 0.0
        %v786 = vmax.f32 %v770, 0.0
        %v787 = vmax.f32 %v771, 0.0
        %v788 = vmax.f32 %v772, 0.0
        %v789 = vmax.f32 %v773, 0.0
        %v790 = vmax.f32 %v774, 0.0
        %v791 = vmax.f32 %v775, 0.0
        %s792 = smul.u32 %s25, 5
        %s793 = sadd.s32 %s792, %s26
        %s794 = smul.u32 %s793, 128
        %v795 = vlaneseq
        %v796 = vshrl.u32 %v795, 7
        %v797 = vadd.s32 %v796, 8
        %v798 = vadd.s32 %v796, 16
        %v799 = vadd.s32 %v796, 24
        %v800 = vadd.s32 %v796, 32
        %v801 = vadd.s32 %v796, 40
        %v802 = vadd.s32 %v796, 48
        %v803 = vadd.s32 %v796, 56
        %v804 = vadd.s32 %v796, 64
        %v805 = vadd.s32 %v796, 72
        %v806 = vadd.s32 %v796, 80
        %v807 = vadd.s32 %v796, 88
        %v808 = vadd.s32 %v796, 96
        %v809 = vadd.s32 %v796, 104
        %v810 = vadd.s32 %v796, 112
        %v811 = vadd.s32 %v796, 120
        %v812 = vstv %s794
        %v813 = vadd.s32 %v812, %v796
        %v814 = vadd.s32 %v812, %v797
        %v815 = vadd.s32 %v812, %v798
        %v816 = vadd.s32 %v812, %v799
        %v817 = vadd.s32 %v812, %v800
        %v818 = vadd.s32 %v812, %v801
        %v819 = vadd.s32 %v812, %v802
        %v820 = vadd.s32 %v812, %v803
        %v821 = vadd.s32 %v812, %v804
        %v822 = vadd.s32 %v812, %v805
        %v823 = vadd.s32 %v812, %v806
        %v824 = vadd.s32 %v812, %v807
        %v825 = vadd.s32 %v812, %v808
        %v826 = vadd.s32 %v812, %v809
        %v827 = vadd.s32 %v812, %v810
        %v828 = vadd.s32 %v812, %v811
        %vm829 = vcmp.lt.s32.totalorder %v813, 529
        %vm830 = vcmp.lt.s32.totalorder %v814, 529
        %vm831 = vcmp.lt.s32.totalorder %v815, 529
        %vm832 = vcmp.lt.s32.totalorder %v816, 529
        %vm833 = vcmp.lt.s32.totalorder %v817, 529
        %vm834 = vcmp.lt.s32.totalorder %v818, 529
        %vm835 = vcmp.lt.s32.totalorder %v819, 529
        %vm836 = vcmp.lt.s32.totalorder %v820, 529
        %vm837 = vcmp.lt.s32.totalorder %v821, 529
        %vm838 = vcmp.lt.s32.totalorder %v822, 529
        %vm839 = vcmp.lt.s32.totalorder %v823, 529
        %vm840 = vcmp.lt.s32.totalorder %v824, 529
        %vm841 = vcmp.lt.s32.totalorder %v825, 529
        %vm842 = vcmp.lt.s32.totalorder %v826, 529
        %vm843 = vcmp.lt.s32.totalorder %v827, 529
        %vm844 = vcmp.lt.s32.totalorder %v828, 529
        %v845 = vsel %vm829, %v776, 0.0
        %v846 = vsel %vm830, %v777, 0.0
        %v847 = vsel %vm831, %v778, 0.0
        %v848 = vsel %vm832, %v779, 0.0
        %v849 = vsel %vm833, %v780, 0.0
        %v850 = vsel %vm834, %v781, 0.0
        %v851 = vsel %vm835, %v782, 0.0
        %v852 = vsel %vm836, %v783, 0.0
        %v853 = vsel %vm837, %v784, 0.0
        %v854 = vsel %vm838, %v785, 0.0
        %v855 = vsel %vm839, %v786, 0.0
        %v856 = vsel %vm840, %v787, 0.0
        %v857 = vsel %vm841, %v788, 0.0
        %v858 = vsel %vm842, %v789, 0.0
        %v859 = vsel %vm843, %v790, 0.0
        %v860 = vsel %vm844, %v791, 0.0
        %v861 = vunpack.c.l.bf16 %v254
        %v862 = vunpack.c.h.bf16 %v254
        %v863 = vunpack.c.l.bf16 %v255
        %v864 = vunpack.c.h.bf16 %v255
        %v865 = vunpack.c.l.bf16 %v256
        %v866 = vunpack.c.h.bf16 %v256
        %v867 = vunpack.c.l.bf16 %v257
        %v868 = vunpack.c.h.bf16 %v257
        %v869 = vunpack.c.l.bf16 %v258
        %v870 = vunpack.c.h.bf16 %v258
        %v871 = vunpack.c.l.bf16 %v259
        %v872 = vunpack.c.h.bf16 %v259
        %v873 = vunpack.c.l.bf16 %v260
        %v874 = vunpack.c.h.bf16 %v260
        %v875 = vunpack.c.l.bf16 %v261
        %v876 = vunpack.c.h.bf16 %v261
        %v877 = vunpack.c.l.bf16 %v262
        %v878 = vunpack.c.h.bf16 %v262
        %v879 = vunpack.c.l.bf16 %v263
        %v880 = vunpack.c.h.bf16 %v263
        %v881 = vunpack.c.l.bf16 %v264
        %v882 = vunpack.c.h.bf16 %v264
        %v883 = vunpack.c.l.bf16 %v265
        %v884 = vunpack.c.h.bf16 %v265
        %v885 = vunpack.c.l.bf16 %v266
        %v886 = vunpack.c.h.bf16 %v266
        %v887 = vunpack.c.l.bf16 %v267
        %v888 = vunpack.c.h.bf16 %v267
        %v889 = vunpack.c.l.bf16 %v268
        %v890 = vunpack.c.h.bf16 %v268
        %v891 = vunpack.c.l.bf16 %v269
        %v892 = vunpack.c.h.bf16 %v269
        %v893 = vmul.f32 %v845, %v861
        %v894 = vmul.f32 %v845, %v862
        %v895 = vmul.f32 %v846, %v863
        %v896 = vmul.f32 %v846, %v864
        %v897 = vmul.f32 %v847, %v865
        %v898 = vmul.f32 %v847, %v866
        %v899 = vmul.f32 %v848, %v867
        %v900 = vmul.f32 %v848, %v868
        %v901 = vmul.f32 %v849, %v869
        %v902 = vmul.f32 %v849, %v870
        %v903 = vmul.f32 %v850, %v871
        %v904 = vmul.f32 %v850, %v872
        %v905 = vmul.f32 %v851, %v873
        %v906 = vmul.f32 %v851, %v874
        %v907 = vmul.f32 %v852, %v875
        %v908 = vmul.f32 %v852, %v876
        %v909 = vmul.f32 %v853, %v877
        %v910 = vmul.f32 %v853, %v878
        %v911 = vmul.f32 %v854, %v879
        %v912 = vmul.f32 %v854, %v880
        %v913 = vmul.f32 %v855, %v881
        %v914 = vmul.f32 %v855, %v882
        %v915 = vmul.f32 %v856, %v883
        %v916 = vmul.f32 %v856, %v884
        %v917 = vmul.f32 %v857, %v885
        %v918 = vmul.f32 %v857, %v886
        %v919 = vmul.f32 %v858, %v887
        %v920 = vmul.f32 %v858, %v888
        %v921 = vmul.f32 %v859, %v889
        %v922 = vmul.f32 %v859, %v890
        %v923 = vmul.f32 %v860, %v891
        %v924 = vmul.f32 %v860, %v892
        %v925 = vadd.f32 %v893, %v895
        %v926 = vadd.f32 %v925, %v897
        %v927 = vadd.f32 %v926, %v899
        %v928 = vadd.f32 %v927, %v901
        %v929 = vadd.f32 %v928, %v903
        %v930 = vadd.f32 %v929, %v905
        %v931 = vadd.f32 %v930, %v907
        %v932 = vadd.f32 %v931, %v909
        %v933 = vadd.f32 %v932, %v911
        %v934 = vadd.f32 %v933, %v913
        %v935 = vadd.f32 %v934, %v915
        %v936 = vadd.f32 %v935, %v917
        %v937 = vadd.f32 %v936, %v919
        %v938 = vadd.f32 %v937, %v921
        %v939 = vadd.f32 %v938, %v923
        %v940 = vadd.f32 %v894, %v896
        %v941 = vadd.f32 %v940, %v898
        %v942 = vadd.f32 %v941, %v900
        %v943 = vadd.f32 %v942, %v902
        %v944 = vadd.f32 %v943, %v904
        %v945 = vadd.f32 %v944, %v906
        %v946 = vadd.f32 %v945, %v908
        %v947 = vadd.f32 %v946, %v910
        %v948 = vadd.f32 %v947, %v912
        %v949 = vadd.f32 %v948, %v914
        %v950 = vadd.f32 %v949, %v916
        %v951 = vadd.f32 %v950, %v918
        %v952 = vadd.f32 %v951, %v920
        %v953 = vadd.f32 %v952, %v922
        %v954 = vadd.f32 %v953, %v924
        %v955 = vadd.f32 %v845, %v846
        %v956 = vadd.f32 %v955, %v847
        %v957 = vadd.f32 %v956, %v848
        %v958 = vadd.f32 %v957, %v849
        %v959 = vadd.f32 %v958, %v850
        %v960 = vadd.f32 %v959, %v851
        %v961 = vadd.f32 %v960, %v852
        %v962 = vadd.f32 %v961, %v853
        %v963 = vadd.f32 %v962, %v854
        %v964 = vadd.f32 %v963, %v855
        %v965 = vadd.f32 %v964, %v856
        %v966 = vadd.f32 %v965, %v857
        %v967 = vadd.f32 %v966, %v858
        %v968 = vadd.f32 %v967, %v859
        %v969 = vadd.f32 %v968, %v860
        %v970 = vld [vmem:[#allocation8] sm:$0xff]
        %v971 = vld [vmem:[#allocation8 + $0x8] sm:$0xff]
        %v972 = vsub.f32 %v969, %v939
        %v973 = vsub.f32 %v969, %v954
        %v974 = vadd.f32 %v970, %v972
        %v975 = vadd.f32 %v971, %v973
        %976 = vst [vmem:[#allocation8] sm:$0xff] %v974
        %977 = vst [vmem:[#allocation8 + $0x8] sm:$0xff] %v975
        // Predicated region
        $region49: #{tpu_custom_call.1} parent=35 // pred_check
          %p978 = pneg %p144
        $region50: #{tpu_custom_call.1} parent=35 // pred_check_branch
          %980 = sbr.rel (%p978) target = $region52
        $region51: #{tpu_custom_call.1} parent=35 // pred_region
          %s982 = ssub.s32 256, 256
          %983 = vsyncadd [#allocation5], %s982
          %s984 = smul.addr %s25, 2
          %s985 = smul.addr %s984, 128
          %s986 = scalar_lea.hbm %s4, %s985
          %s988 = sshll.u32 [#allocation8], 4
          %s989 = int_to_ptr.vmem [resolvable:$true] %s988
          %991 = dma.vmem_to_hbm [thread:$0]  %s989, 256, %s986, [#allocation5]
        $region52: #{tpu_custom_call.1} parent=35 // pred_fallthru
          _
        // Predicated region
        $region53: #{tpu_custom_call.1} parent=35 // pred_check
          %p992 = pneg %p144
        $region54: #{tpu_custom_call.1} parent=35 // pred_check_branch
          %994 = sbr.rel (%p992) target = $region56
        $region55: #{tpu_custom_call.1} parent=35 // pred_region
          %995 = dma.done [#allocation5], 256
        $region56: #{tpu_custom_call.1} parent=35 // pred_fallthru
          _
      $region36: #{tpu_custom_call.1} parent=5 // pred_fallthru
        _
      %p996 = scmp.le.s32.totalorder 2, %s16
      // Predicated region
      $region57: #{tpu_custom_call.1} parent=5 // pred_check
        %p997 = pneg %p996
      $region58: #{tpu_custom_call.1} parent=5 // pred_check_branch
        %999 = sbr.rel (%p997) target = $region60
      $region59: #{tpu_custom_call.1} parent=5 // pred_region
        %s1000 = ssub.s32 %s16, 2
      $region60: #{tpu_custom_call.1} parent=5 // pred_fallthru
        _
    $region6: #{tpu_custom_call.1} parent=1 // loop_footer
      %s20 = sadd.s32 1, %s16
    $region7: #{tpu_custom_call.1} parent=1 // loop_footer_branch
      %15 = sbr.rel target = $region3
    $region8: #{tpu_custom_call.1} parent=1 // loop_exit
      _
    %1001 = vsyncpa [#allocation4], 1
    %s1002 = scalar_lea.sflag [#allocation4], 1
    %1003 = vsyncpa %s1002, 1
    %1004 = vsyncpa [#allocation7], 1
    %1005 = vsyncpa [#allocation5], 1
    %s1006 = scalar_lea.sflag [#allocation5], 1
    %1007 = vsyncpa %s1006, 1

// kernel: tpu_custom_call.1
$region0: #{tpu_custom_call.1}
  #allocation0 [shape = 'u32[]', space=smem, size = 0x4, offset = 0x4, fixed_abs, tag = 'smem constant byte address 0x4 - core index']
  #allocation1 [shape = 'u32[144,128]{1,0:T(1,128)}', space=vmem, size = 0x12000, scoped, tag = 'internal scratch']
  #allocation2 [shape = 'f32[1,1]{1,0:T(1,128)S(6)}', space=smem, size = 0x200, scoped, tag = 'scoped memory for tpu_custom_call.1']
  %s0 = inlined_call_operand.hbm [shape: bf16[640,256], index: 0, kind: input, shape index: {}]
  %s1 = inlined_call_operand.hbm [shape: bf16[256,128], index: 1, kind: input, shape index: {}]
  %s2 = inlined_call_operand.vmem [shape: f32[1,128], index: 2, kind: input, shape index: {}]
  %s3 = inlined_call_operand.<no memory space> [shape: f32[1,1], index: 3, kind: input, shape index: {}]
  %s4 = inlined_call_operand.hbm [shape: f32[8,256], index: 4, kind: output, shape index: {}]
  %s5 = sld [smem:[#allocation0]]
  $region61: #{tpu_custom_call.1} parent=0
    _
  %s7 = ssub.s32 1, %s5
  %s8 = scalar_select 0, %s7, %s5
  %9 = sst [smem:[#allocation2]] %s3
  $region1: #{tpu_custom_call.1} parent=0
    #allocation3 [shape = 'u8[131072]{0}', space=vmem, size = 0x20000, scoped, tag = 'input window, operand 0']
    #allocation4 [shape = 's32[2]{0}', space=sflag, size = 0x8, scoped, tag = 'scoped memory for tpu_custom_call.1']
    #allocation5 [shape = 's32[2]{0}', space=sflag, size = 0x8, scoped, tag = 'scoped memory for tpu_custom_call.1']
    #allocation6 [shape = 'u8[65536]{0}', space=vmem, size = 0x10000, scoped, tag = 'input window, operand 1, single buffered']
    #allocation7 [shape = 's32[1]{0}', space=sflag, size = 0x4, scoped, tag = 'scoped memory for tpu_custom_call.1']
    #allocation8 [shape = 'u8[8192]{0}', space=vmem, size = 0x2000, scoped, tag = 'output window, operand 0, single buffered']
    %10 = vsyncpa [#allocation4], 0
    %s11 = scalar_lea.sflag [#allocation4], 1
    %12 = vsyncpa %s11, 0
    %13 = vsyncpa [#allocation7], 0
    %14 = vsyncpa [#allocation5], 0
    loop: start=0, step=1, limit=7
    $region2: #{tpu_custom_call.1} parent=1 // loop_pre_header
      _
    $region3: #{tpu_custom_call.1} parent=1 // loop_header
      %s16 = sphi 0, %s20
      %p17 = scmp.ge.s32.totalorder %s16, 7
      %s23 = sphi 0, %s35
      %s24 = sphi 0, %s31
      %s25 = sphi 0, %s23
      %s26 = sphi 0, %s24
      %s27 = sphi 0, %s25
      %s28 = sphi 0, %s26
      %s42 = sphi 0, %s44
      %s45 = sphi 0, %s42
      %s46 = sphi 0, %s45
      %s62 = sphi 0, %s46
      %s66 = sphi 0, %s66
      %s68 = sphi 0, %s66
      %s69 = sphi 0, %s68
      %s83 = sphi 0, %s69
      %s87 = sphi 0, %s87
      %s89 = sphi 0, %s87
      %s90 = sphi 0, %s89
      %s104 = sphi 0, %s90
      %s108 = sphi 0, %s108
      %s110 = sphi 0, %s108
      %s111 = sphi 0, %s110
      %s125 = sphi 0, %s111
      %s131 = sphi 0, %s133
      %s134 = sphi 0, %s131
      %s135 = sphi 0, %s134
      %s151 = sphi 0, %s135
    $region4: #{tpu_custom_call.1} parent=1 // loop_header_branch
      %19 = sbr.rel (%p17) target = $region8
    $region5: #{tpu_custom_call.1} parent=1 // loop_body
      %s21 = ssub.s32 %s16, 1
      %s22 = ssub.s32 %s16, 2
      %s29 = sadd.s32 1, %s24
      %p30 = scmp.ge.s32.totalorder %s29, 5
      %s31 = scalar_select %p30, 0, %s29
      %s32 = sadd.s32 1, %s23
      %s33 = scalar_select %p30, %s32, %s23
      %p34 = scmp.ge.s32.totalorder %s33, 1
      %s35 = scalar_select %p34, 0, %s33
      %s36 = smul.u32 %s23, 5
      %s37 = sadd.s32 %s36, %s24
      %s38 = smul.u32 %s35, 5
      %s39 = sadd.s32 %s38, %s31
      %s40 = ssub.s32 %s37, %s39
      %p41 = scmp.eq.s32.totalorder %s40, 0
      %s43 = sadd.s32 %s42, 1
      %s44 = scalar_select %p41, %s42, %s43
      %p47 = pneg %p41
      %p48 = scmp.eq.s32.totalorder %s16, 4
      %p49 = por %p47, %p48
      %p50 = scmp.ne.s32.totalorder %s42, %s45
      %p51 = scmp.eq.s32.totalorder %s16, 0
      %p52 = por %p50, %p51
      %p53 = scmp.ne.s32.totalorder %s42, %s45
      %p54 = scmp.eq.s32.totalorder %s21, 4
      %p55 = por %p53, %p54
      %p56 = scmp.ne.s32.totalorder %s45, %s46
      %p57 = scmp.eq.s32.totalorder %s21, 0
      %p58 = por %p56, %p57
      %p59 = scmp.ne.s32.totalorder %s45, %s46
      %p60 = scmp.eq.s32.totalorder %s22, 4
      %p61 = por %p59, %p60
      %p63 = scmp.ne.s32.totalorder %s46, %s62
      %p64 = scmp.eq.s32.totalorder %s22, 0
      %p65 = por %p63, %p64
      %s67 = sadd.s32 %s66, 1
      %p70 = scmp.eq.s32.totalorder %s16, 4
      %p71 = scmp.ne.s32.totalorder %s66, %s68
      %p72 = scmp.eq.s32.totalorder %s16, 0
      %p73 = por %p71, %p72
      %p74 = scmp.ne.s32.totalorder %s66, %s68
      %p75 = scmp.eq.s32.totalorder %s21, 4
      %p76 = por %p74, %p75
      %p77 = scmp.ne.s32.totalorder %s68, %s69
      %p78 = scmp.eq.s32.totalorder %s21, 0
      %p79 = por %p77, %p78
      %p80 = scmp.ne.s32.totalorder %s68, %s69
      %p81 = scmp.eq.s32.totalorder %s22, 4
      %p82 = por %p80, %p81
      %p84 = scmp.ne.s32.totalorder %s69, %s83
      %p85 = scmp.eq.s32.totalorder %s22, 0
      %p86 = por %p84, %p85
      %s88 = sadd.s32 %s87, 1
      %p91 = scmp.eq.s32.totalorder %s16, 4
      %p92 = scmp.ne.s32.totalorder %s87, %s89
      %p93 = scmp.eq.s32.totalorder %s16, 0
      %p94 = por %p92, %p93
      %p95 = scmp.ne.s32.totalorder %s87, %s89
      %p96 = scmp.eq.s32.totalorder %s21, 4
      %p97 = por %p95, %p96
      %p98 = scmp.ne.s32.totalorder %s89, %s90
      %p99 = scmp.eq.s32.totalorder %s21, 0
      %p100 = por %p98, %p99
      %p101 = scmp.ne.s32.totalorder %s89, %s90
      %p102 = scmp.eq.s32.totalorder %s22, 4
      %p103 = por %p101, %p102
      %p105 = scmp.ne.s32.totalorder %s90, %s104
      %p106 = scmp.eq.s32.totalorder %s22, 0
      %p107 = por %p105, %p106
      %s109 = sadd.s32 %s108, 1
      %p112 = scmp.eq.s32.totalorder %s16, 4
      %p113 = scmp.ne.s32.totalorder %s108, %s110
      %p114 = scmp.eq.s32.totalorder %s16, 0
      %p115 = por %p113, %p114
      %p116 = scmp.ne.s32.totalorder %s108, %s110
      %p117 = scmp.eq.s32.totalorder %s21, 4
      %p118 = por %p116, %p117
      %p119 = scmp.ne.s32.totalorder %s110, %s111
      %p120 = scmp.eq.s32.totalorder %s21, 0
      %p121 = por %p119, %p120
      %p122 = scmp.ne.s32.totalorder %s110, %s111
      %p123 = scmp.eq.s32.totalorder %s22, 4
      %p124 = por %p122, %p123
      %p126 = scmp.ne.s32.totalorder %s111, %s125
      %p127 = scmp.eq.s32.totalorder %s22, 0
      %p128 = por %p126, %p127
      %s129 = ssub.s32 %s23, %s35
      %p130 = scmp.eq.s32.totalorder %s129, 0
      %s132 = sadd.s32 %s131, 1
      %s133 = scalar_select %p130, %s131, %s132
      %p136 = pneg %p130
      %p137 = scmp.eq.s32.totalorder %s16, 4
      %p138 = por %p136, %p137
      %p139 = scmp.ne.s32.totalorder %s131, %s134
      %p140 = scmp.eq.s32.totalorder %s16, 0
      %p141 = por %p139, %p140
      %p142 = scmp.ne.s32.totalorder %s131, %s134
      %p143 = scmp.eq.s32.totalorder %s21, 4
      %p144 = por %p142, %p143
      %p145 = scmp.ne.s32.totalorder %s134, %s135
      %p146 = scmp.eq.s32.totalorder %s21, 0
      %p147 = por %p145, %p146
      %p148 = scmp.ne.s32.totalorder %s134, %s135
      %p149 = scmp.eq.s32.totalorder %s22, 4
      %p150 = por %p148, %p149
      %p152 = scmp.ne.s32.totalorder %s135, %s151
      %p153 = scmp.eq.s32.totalorder %s22, 0
      %p154 = por %p152, %p153
      %p155 = scmp.le.s32.totalorder 1, %s16
      %p156 = scmp.lt.s32.totalorder %s16, 6
      %p157 = pnand %p155, %p156
      %p158 = pneg %p157
      // Predicated region
      $region9: #{tpu_custom_call.1} parent=5 // pred_check
        _
      $region10: #{tpu_custom_call.1} parent=5 // pred_check_branch
        %160 = sbr.rel (%p157) target = $region12
      $region11: #{tpu_custom_call.1} parent=5 // pred_region
        %s161 = ssub.s32 %s16, 1
        // Predicated region
        $region13: #{tpu_custom_call.1} parent=11 // pred_check
          %p162 = pneg %p79
        $region14: #{tpu_custom_call.1} parent=11 // pred_check_branch
          %164 = sbr.rel (%p162) target = $region16
        $region15: #{tpu_custom_call.1} parent=11 // pred_region
          %s166 = ssub.s32 2048, 2048
          %167 = vsyncadd [#allocation7], %s166
          %s168 = sshll.u32 [#allocation6], 4
          %s169 = int_to_ptr.vmem [resolvable:$true] %s168
          %174 = dma.hbm_to_vmem [thread:$0]  %s1, 2048, %s169, [#allocation7], 64, 64, 4
        $region16: #{tpu_custom_call.1} parent=11 // pred_fallthru
          _
        // Predicated region
        $region17: #{tpu_custom_call.1} parent=11 // pred_check
          %p175 = pneg %p100
        $region18: #{tpu_custom_call.1} parent=11 // pred_check_branch
          %177 = sbr.rel (%p175) target = $region20
        $region19: #{tpu_custom_call.1} parent=11 // pred_region
          _
        $region20: #{tpu_custom_call.1} parent=11 // pred_fallthru
          _
        // Predicated region
        $region21: #{tpu_custom_call.1} parent=11 // pred_check
          %p178 = pneg %p121
        $region22: #{tpu_custom_call.1} parent=11 // pred_check_branch
          %180 = sbr.rel (%p178) target = $region24
        $region23: #{tpu_custom_call.1} parent=11 // pred_region
          _
        $region24: #{tpu_custom_call.1} parent=11 // pred_fallthru
          _
      $region12: #{tpu_custom_call.1} parent=5 // pred_fallthru
        _
      %p181 = scmp.lt.s32.totalorder %s16, 5
      // Predicated region
      $region25: #{tpu_custom_call.1} parent=5 // pred_check
        %p182 = pneg %p181
      $region26: #{tpu_custom_call.1} parent=5 // pred_check_branch
        %184 = sbr.rel (%p182) target = $region28
      $region27: #{tpu_custom_call.1} parent=5 // pred_region
        // Predicated region
        $region29: #{tpu_custom_call.1} parent=27 // pred_check
          %p185 = pneg %p52
        $region30: #{tpu_custom_call.1} parent=27 // pred_check_branch
          %187 = sbr.rel (%p185) target = $region32
        $region31: #{tpu_custom_call.1} parent=27 // pred_region
          %s188 = sand.u32 %s42, 1
          %s189 = scalar_lea.sflag [#allocation4], %s188
          %s190 = sand.u32 %s42, 1
          %s191 = smul.addr %s190, 128
          %s192 = scalar_lea.vmem [#allocation3], %s191
          %s193 = smul.u32 %s23, 5
          %s194 = sadd.s32 %s193, %s24
          %s195 = smul.u32 16, %s194
          %s197 = ssub.s32 2048, 2048
          %198 = vsyncadd %s189, %s197
          %s199 = smul.addr %s195, 2
          %s200 = smul.addr %s199, 64
          %s201 = scalar_lea.hbm %s0, %s200
          %s202 = sshll.u32 %s192, 4
          %s203 = int_to_ptr.vmem [resolvable:$true] %s202
          %208 = dma.hbm_to_vmem [thread:$0]  %s201, 2048, %s203, %s189, 128, 128, 8
        $region32: #{tpu_custom_call.1} parent=27 // pred_fallthru
          _
      $region28: #{tpu_custom_call.1} parent=5 // pred_fallthru
        _
      %p209 = scmp.le.s32.totalorder 1, %s16
      %p210 = scmp.lt.s32.totalorder %s16, 6
      %p211 = pnand %p209, %p210
      %p212 = pneg %p211
      // Predicated region
      $region33: #{tpu_custom_call.1} parent=5 // pred_check
        _
      $region34: #{tpu_custom_call.1} parent=5 // pred_check_branch
        %214 = sbr.rel (%p211) target = $region36
      $region35: #{tpu_custom_call.1} parent=5 // pred_region
        %s215 = ssub.s32 %s16, 1
        %s216 = sand.u32 %s45, 1
        %s217 = scalar_lea.sflag [#allocation4], %s216
        %s218 = sand.u32 %s45, 1
        %s219 = smul.addr %s218, 128
        %s220 = scalar_lea.vmem [#allocation3], %s219
        // Predicated region
        $region37: #{tpu_custom_call.1} parent=35 // pred_check
          %p221 = pneg %p58
        $region38: #{tpu_custom_call.1} parent=35 // pred_check_branch
          %223 = sbr.rel (%p221) target = $region40
        $region39: #{tpu_custom_call.1} parent=35 // pred_region
          %224 = dma.done %s217, 2048
        $region40: #{tpu_custom_call.1} parent=35 // pred_fallthru
          _
        // Predicated region
        $region41: #{tpu_custom_call.1} parent=35 // pred_check
          %p225 = pneg %p79
        $region42: #{tpu_custom_call.1} parent=35 // pred_check_branch
          %227 = sbr.rel (%p225) target = $region44
        $region43: #{tpu_custom_call.1} parent=35 // pred_region
          %228 = dma.done [#allocation7], 2048
        $region44: #{tpu_custom_call.1} parent=35 // pred_fallthru
          _
        %s229 = sand.u32 %s45, 1
        %s230 = scalar_lea.sflag [#allocation4], %s229
        %s231 = sand.u32 %s45, 1
        %s232 = smul.addr %s231, 128
        %s233 = scalar_lea.vmem [#allocation3], %s232
        %p234 = pneg %p58
        %p235 = pneg %p55
        %p236 = pneg %p79
        %p237 = pneg %p76
        %p238 = pneg %p100
        %p239 = pneg %p97
        %p240 = pneg %p121
        %p241 = pneg %p118
        %p242 = pneg %p147
        %p243 = pneg %p144
        %s244 = smul.u32 %s25, 5
        %s245 = sadd.s32 %s244, %s26
        %s246 = smul.u32 16, %s245
        %p248 = scmp.eq.s32.totalorder %s26, 0
        // Predicated region
        $region45: #{tpu_custom_call.1} parent=35 // pred_check
          %p249 = pneg %p248
        $region46: #{tpu_custom_call.1} parent=35 // pred_check_branch
          %251 = sbr.rel (%p249) target = $region48
        $region47: #{tpu_custom_call.1} parent=35 // pred_region
          %252 = vst [vmem:[#allocation8] sm:$0xff] 0.0
          %253 = vst [vmem:[#allocation8 + $0x8] sm:$0xff] 0.0
        $region48: #{tpu_custom_call.1} parent=35 // pred_fallthru
          _
        %v254 = vld [vmem:[%s220] sm:$0xff]
        %v255 = vld [vmem:[%s220 + $0x8] sm:$0xff]
        %v256 = vld [vmem:[%s220 + $0x10] sm:$0xff]
        %v257 = vld [vmem:[%s220 + $0x18] sm:$0xff]
        %v258 = vld [vmem:[%s220 + $0x20] sm:$0xff]
        %v259 = vld [vmem:[%s220 + $0x28] sm:$0xff]
        %v260 = vld [vmem:[%s220 + $0x30] sm:$0xff]
        %v261 = vld [vmem:[%s220 + $0x38] sm:$0xff]
        %v262 = vld [vmem:[%s220 + $0x40] sm:$0xff]
        %v263 = vld [vmem:[%s220 + $0x48] sm:$0xff]
        %v264 = vld [vmem:[%s220 + $0x50] sm:$0xff]
        %v265 = vld [vmem:[%s220 + $0x58] sm:$0xff]
        %v266 = vld [vmem:[%s220 + $0x60] sm:$0xff]
        %v267 = vld [vmem:[%s220 + $0x68] sm:$0xff]
        %v268 = vld [vmem:[%s220 + $0x70] sm:$0xff]
        %v269 = vld [vmem:[%s220 + $0x78] sm:$0xff]
        %v270 = vld [vmem:[#allocation6] sm:$0xf]
        %v271 = vld [vmem:[#allocation6 + $0x4] sm:$0xf]
        %v272 = vld [vmem:[#allocation6 + $0x8] sm:$0xf]
        %v273 = vld [vmem:[#allocation6 + $0xc] sm:$0xf]
        %v274 = vld [vmem:[#allocation6 + $0x10] sm:$0xf]
        %v275 = vld [vmem:[#allocation6 + $0x14] sm:$0xf]
        %v276 = vld [vmem:[#allocation6 + $0x18] sm:$0xf]
        %v277 = vld [vmem:[#allocation6 + $0x1c] sm:$0xf]
        %v278 = vld [vmem:[#allocation6 + $0x20] sm:$0xf]
        %v279 = vld [vmem:[#allocation6 + $0x24] sm:$0xf]
        %v280 = vld [vmem:[#allocation6 + $0x28] sm:$0xf]
        %v281 = vld [vmem:[#allocation6 + $0x2c] sm:$0xf]
        %v282 = vld [vmem:[#allocation6 + $0x30] sm:$0xf]
        %v283 = vld [vmem:[#allocation6 + $0x34] sm:$0xf]
        %v284 = vld [vmem:[#allocation6 + $0x38] sm:$0xf]
        %v285 = vld [vmem:[#allocation6 + $0x3c] sm:$0xf]
        %v286 = vld [vmem:[#allocation6 + $0x40] sm:$0xf]
        %v287 = vld [vmem:[#allocation6 + $0x44] sm:$0xf]
        %v288 = vld [vmem:[#allocation6 + $0x48] sm:$0xf]
        %v289 = vld [vmem:[#allocation6 + $0x4c] sm:$0xf]
        %v290 = vld [vmem:[#allocation6 + $0x50] sm:$0xf]
        %v291 = vld [vmem:[#allocation6 + $0x54] sm:$0xf]
        %v292 = vld [vmem:[#allocation6 + $0x58] sm:$0xf]
        %v293 = vld [vmem:[#allocation6 + $0x5c] sm:$0xf]
        %v294 = vld [vmem:[#allocation6 + $0x60] sm:$0xf]
        %v295 = vld [vmem:[#allocation6 + $0x64] sm:$0xf]
        %v296 = vld [vmem:[#allocation6 + $0x68] sm:$0xf]
        %v297 = vld [vmem:[#allocation6 + $0x6c] sm:$0xf]
        %v298 = vld [vmem:[#allocation6 + $0x70] sm:$0xf]
        %v299 = vld [vmem:[#allocation6 + $0x74] sm:$0xf]
        %v300 = vld [vmem:[#allocation6 + $0x78] sm:$0xf]
        %v301 = vld [vmem:[#allocation6 + $0x7c] sm:$0xf]
        %v318 = vunpack.c.l.b16 %v254
        %v319 = vunpack.c.h.b16 %v254
        %v320 = vunpack.c.l.b16 %v255
        %v321 = vunpack.c.h.b16 %v255
        %v322 = vunpack.c.l.b16 %v256
        %v323 = vunpack.c.h.b16 %v256
        %v324 = vunpack.c.l.b16 %v257
        %v325 = vunpack.c.h.b16 %v257
        %v326 = vunpack.c.l.b16 %v258
        %v327 = vunpack.c.h.b16 %v258
        %v328 = vunpack.c.l.b16 %v259
        %v329 = vunpack.c.h.b16 %v259
        %v330 = vunpack.c.l.b16 %v260
        %v331 = vunpack.c.h.b16 %v260
        %v332 = vunpack.c.l.b16 %v261
        %v333 = vunpack.c.h.b16 %v261
        %v334 = vunpack.c.l.b16 %v262
        %v335 = vunpack.c.h.b16 %v262
        %v336 = vunpack.c.l.b16 %v263
        %v337 = vunpack.c.h.b16 %v263
        %v338 = vunpack.c.l.b16 %v264
        %v339 = vunpack.c.h.b16 %v264
        %v340 = vunpack.c.l.b16 %v265
        %v341 = vunpack.c.h.b16 %v265
        %v342 = vunpack.c.l.b16 %v266
        %v343 = vunpack.c.h.b16 %v266
        %v344 = vunpack.c.l.b16 %v267
        %v345 = vunpack.c.h.b16 %v267
        %v346 = vunpack.c.l.b16 %v268
        %v347 = vunpack.c.h.b16 %v268
        %v348 = vunpack.c.l.b16 %v269
        %v349 = vunpack.c.h.b16 %v269
        %v350 = vpack.c.b16 %v320, %v318
        %v351 = vpack.c.b16 %v321, %v319
        %v352 = vpack.c.b16 %v324, %v322
        %v353 = vpack.c.b16 %v325, %v323
        %v354 = vpack.c.b16 %v328, %v326
        %v355 = vpack.c.b16 %v329, %v327
        %v356 = vpack.c.b16 %v332, %v330
        %v357 = vpack.c.b16 %v333, %v331
        %v358 = vpack.c.b16 %v336, %v334
        %v359 = vpack.c.b16 %v337, %v335
        %v360 = vpack.c.b16 %v340, %v338
        %v361 = vpack.c.b16 %v341, %v339
        %v362 = vpack.c.b16 %v344, %v342
        %v363 = vpack.c.b16 %v345, %v343
        %v364 = vpack.c.b16 %v348, %v346
        %v365 = vpack.c.b16 %v349, %v347
        %v414 = vunpack.c.l.b16 %v270
        %v415 = vunpack.c.l.b16 %v271
        %v416 = vunpack.c.l.b16 %v272
        %v417 = vunpack.c.l.b16 %v273
        %v418 = vunpack.c.l.b16 %v274
        %v419 = vunpack.c.l.b16 %v275
        %v420 = vunpack.c.l.b16 %v276
        %v421 = vunpack.c.l.b16 %v277
        %v422 = vunpack.c.l.b16 %v278
        %v423 = vunpack.c.l.b16 %v279
        %v424 = vunpack.c.l.b16 %v280
        %v425 = vunpack.c.l.b16 %v281
        %v426 = vunpack.c.l.b16 %v282
        %v427 = vunpack.c.l.b16 %v283
        %v428 = vunpack.c.l.b16 %v284
        %v429 = vunpack.c.l.b16 %v285
        %v430 = vunpack.c.l.b16 %v286
        %v431 = vunpack.c.l.b16 %v287
        %v432 = vunpack.c.l.b16 %v288
        %v433 = vunpack.c.l.b16 %v289
        %v434 = vunpack.c.l.b16 %v290
        %v435 = vunpack.c.l.b16 %v291
        %v436 = vunpack.c.l.b16 %v292
        %v437 = vunpack.c.l.b16 %v293
        %v438 = vunpack.c.l.b16 %v294
        %v439 = vunpack.c.l.b16 %v295
        %v440 = vunpack.c.l.b16 %v296
        %v441 = vunpack.c.l.b16 %v297
        %v442 = vunpack.c.l.b16 %v298
        %v443 = vunpack.c.l.b16 %v299
        %v444 = vunpack.c.l.b16 %v300
        %v445 = vunpack.c.l.b16 %v301
        %v446 = vpack.c.b16 %v415, %v414
        %v447 = vpack.c.b16 %v417, %v416
        %v448 = vpack.c.b16 %v419, %v418
        %v449 = vpack.c.b16 %v421, %v420
        %v450 = vpack.c.b16 %v423, %v422
        %v451 = vpack.c.b16 %v425, %v424
        %v452 = vpack.c.b16 %v427, %v426
        %v453 = vpack.c.b16 %v429, %v428
        %v454 = vpack.c.b16 %v431, %v430
        %v455 = vpack.c.b16 %v433, %v432
        %v456 = vpack.c.b16 %v435, %v434
        %v457 = vpack.c.b16 %v437, %v436
        %v458 = vpack.c.b16 %v439, %v438
        %v459 = vpack.c.b16 %v441, %v440
        %v460 = vpack.c.b16 %v443, %v442
        %v461 = vpack.c.b16 %v445, %v444
        %478 = vmatprep.subr.bf16.mxu0 0
        %479 = vmatpush1.bf16.msra.mxu0 %v453
        %480 = vmatprep.subr.bf16.mxu0 0
        %481 = vmatpush1.bf16.msra.mxu0 %v452
        %482 = vmatprep.subr.bf16.mxu0 0
        %483 = vmatpush1.bf16.msra.mxu0 %v451
        %484 = vmatprep.subr.bf16.mxu0 0
        %485 = vmatpush1.bf16.msra.mxu0 %v450
        %486 = vmatprep.subr.bf16.mxu0 0
        %487 = vmatpush1.bf16.msra.mxu0 %v449
        %488 = vmatprep.subr.bf16.mxu0 0
        %489 = vmatpush1.bf16.msra.mxu0 %v448
        %490 = vmatprep.subr.bf16.mxu0 0
        %491 = vmatpush1.bf16.msra.mxu0 %v447
        %492 = vmatprep.subr.bf16.mxu0 0
        %493 = vmatpush1.bf16.msra.mxu0 %v446
        %494 = vmatprep.subr.bf16.mxu0 0
        %495 = vmatpush2.bf16.msra.mxu0 %v461
        %496 = vmatprep.subr.bf16.mxu0 0
        %497 = vmatpush2.bf16.msra.mxu0 %v460
        %498 = vmatprep.subr.bf16.mxu0 0
        %499 = vmatpush2.bf16.msra.mxu0 %v459
        %500 = vmatprep.subr.bf16.mxu0 0
        %501 = vmatpush2.bf16.msra.mxu0 %v458
        %502 = vmatprep.subr.bf16.mxu0 0
        %503 = vmatpush2.bf16.msra.mxu0 %v457
        %504 = vmatprep.subr.bf16.mxu0 0
        %505 = vmatpush2.bf16.msra.mxu0 %v456
        %506 = vmatprep.subr.bf16.mxu0 0
        %507 = vmatpush2.bf16.msra.mxu0 %v455
        %508 = vmatprep.subr.bf16.mxu0 0
        %509 = vmatpush2.bf16.msra.mxu0 %v454
        %510 = vmatprep.mubr.bf16.mxu0 %v351
        %511 = vmatmul.mubr.bf16.gmra.mxu0 %v350
        %v512 = vpop.f32.mrf.mxu0
        %v513 = vadd.f32 0.0, %v512
        %v514 = vpop.f32.mrf.mxu0
        %v515 = vpop.f32.mrf.mxu0
        %v516 = vadd.f32 0.0, %v515
        %v517 = vpop.f32.mrf.mxu0
        %518 = vmatprep.mubr.bf16.mxu0 %v353
        %519 = vmatmul.mubr.bf16.gmra.mxu0 %v352
        %v520 = vpop.f32.mrf.mxu0
        %v521 = vadd.f32 0.0, %v520
        %v522 = vpop.f32.mrf.mxu0
        %v523 = vpop.f32.mrf.mxu0
        %v524 = vadd.f32 0.0, %v523
        %v525 = vpop.f32.mrf.mxu0
        %526 = vmatprep.mubr.bf16.mxu0 %v355
        %527 = vmatmul.mubr.bf16.gmra.mxu0 %v354
        %v528 = vpop.f32.mrf.mxu0
        %v529 = vadd.f32 0.0, %v528
        %v530 = vpop.f32.mrf.mxu0
        %v531 = vpop.f32.mrf.mxu0
        %v532 = vadd.f32 0.0, %v531
        %v533 = vpop.f32.mrf.mxu0
        %534 = vmatprep.mubr.bf16.mxu0 %v357
        %535 = vmatmul.mubr.bf16.gmra.mxu0 %v356
        %v536 = vpop.f32.mrf.mxu0
        %v537 = vadd.f32 0.0, %v536
        %v538 = vpop.f32.mrf.mxu0
        %v539 = vpop.f32.mrf.mxu0
        %v540 = vadd.f32 0.0, %v539
        %v541 = vpop.f32.mrf.mxu0
        %542 = vmatprep.mubr.bf16.mxu0 %v359
        %543 = vmatmul.mubr.bf16.gmra.mxu0 %v358
        %v544 = vpop.f32.mrf.mxu0
        %v545 = vadd.f32 0.0, %v544
        %v546 = vpop.f32.mrf.mxu0
        %v547 = vpop.f32.mrf.mxu0
        %v548 = vadd.f32 0.0, %v547
        %v549 = vpop.f32.mrf.mxu0
        %550 = vmatprep.mubr.bf16.mxu0 %v361
        %551 = vmatmul.mubr.bf16.gmra.mxu0 %v360
        %v552 = vpop.f32.mrf.mxu0
        %v553 = vadd.f32 0.0, %v552
        %v554 = vpop.f32.mrf.mxu0
        %v555 = vpop.f32.mrf.mxu0
        %v556 = vadd.f32 0.0, %v555
        %v557 = vpop.f32.mrf.mxu0
        %558 = vmatprep.mubr.bf16.mxu0 %v363
        %559 = vmatmul.mubr.bf16.gmra.mxu0 %v362
        %v560 = vpop.f32.mrf.mxu0
        %v561 = vadd.f32 0.0, %v560
        %v562 = vpop.f32.mrf.mxu0
        %v563 = vpop.f32.mrf.mxu0
        %v564 = vadd.f32 0.0, %v563
        %v565 = vpop.f32.mrf.mxu0
        %566 = vmatprep.mubr.bf16.mxu0 %v365
        %567 = vmatmul.mubr.bf16.gmra.mxu0 %v364
        %v568 = vpop.f32.mrf.mxu0
        %v569 = vadd.f32 0.0, %v568
        %v570 = vpop.f32.mrf.mxu0
        %v571 = vpop.f32.mrf.mxu0
        %v572 = vadd.f32 0.0, %v571
        %v573 = vpop.f32.mrf.mxu0
        %574 = vdwg.mxu0
        %v575 = vld [vmem:[%s2] sm:$0x1]
        %v577 = vlaneseq
        %v578 = vshrl.u32 %v577, 7
        %v579 = vsub.s32 0, %v578
        %v580 = vrot.slane %v575, %v579
        %v582 = vsub.f32 %v513, %v580
        %v583 = vsub.f32 %v516, %v580
        %v584 = vsub.f32 %v521, %v580
        %v585 = vsub.f32 %v524, %v580
        %v586 = vsub.f32 %v529, %v580
        %v587 = vsub.f32 %v532, %v580
        %v588 = vsub.f32 %v537, %v580
        %v589 = vsub.f32 %v540, %v580
        %v590 = vsub.f32 %v545, %v580
        %v591 = vsub.f32 %v548, %v580
        %v592 = vsub.f32 %v553, %v580
        %v593 = vsub.f32 %v556, %v580
        %v594 = vsub.f32 %v561, %v580
        %v595 = vsub.f32 %v564, %v580
        %v596 = vsub.f32 %v569, %v580
        %v597 = vsub.f32 %v572, %v580
        %v598 = vmul.f32 %v582, %v582
        %v599 = vmul.f32 %v583, %v583
        %v600 = vmul.f32 %v584, %v584
        %v601 = vmul.f32 %v585, %v585
        %v602 = vmul.f32 %v586, %v586
        %v603 = vmul.f32 %v587, %v587
        %v604 = vmul.f32 %v588, %v588
        %v605 = vmul.f32 %v589, %v589
        %v606 = vmul.f32 %v590, %v590
        %v607 = vmul.f32 %v591, %v591
        %v608 = vmul.f32 %v592, %v592
        %v609 = vmul.f32 %v593, %v593
        %v610 = vmul.f32 %v594, %v594
        %v611 = vmul.f32 %v595, %v595
        %v612 = vmul.f32 %v596, %v596
        %v613 = vmul.f32 %v597, %v597
        %614 = vadd.xlane.f32.xlu0 %v598
        %v615 = vpop.xlane.xlu0 %614
        %616 = vadd.xlane.f32.xlu0 %v599
        %v617 = vpop.xlane.xlu0 %616
        %618 = vadd.xlane.f32.xlu0 %v600
        %v619 = vpop.xlane.xlu0 %618
        %620 = vadd.xlane.f32.xlu0 %v601
        %v621 = vpop.xlane.xlu0 %620
        %622 = vadd.xlane.f32.xlu0 %v602
        %v623 = vpop.xlane.xlu0 %622
        %624 = vadd.xlane.f32.xlu0 %v603
        %v625 = vpop.xlane.xlu0 %624
        %626 = vadd.xlane.f32.xlu0 %v604
        %v627 = vpop.xlane.xlu0 %626
        %628 = vadd.xlane.f32.xlu0 %v605
        %v629 = vpop.xlane.xlu0 %628
        %630 = vadd.xlane.f32.xlu0 %v606
        %v631 = vpop.xlane.xlu0 %630
        %632 = vadd.xlane.f32.xlu0 %v607
        %v633 = vpop.xlane.xlu0 %632
        %634 = vadd.xlane.f32.xlu0 %v608
        %v635 = vpop.xlane.xlu0 %634
        %636 = vadd.xlane.f32.xlu0 %v609
        %v637 = vpop.xlane.xlu0 %636
        %638 = vadd.xlane.f32.xlu0 %v610
        %v639 = vpop.xlane.xlu0 %638
        %640 = vadd.xlane.f32.xlu0 %v611
        %v641 = vpop.xlane.xlu0 %640
        %642 = vadd.xlane.f32.xlu0 %v612
        %v643 = vpop.xlane.xlu0 %642
        %644 = vadd.xlane.f32.xlu0 %v613
        %v645 = vpop.xlane.xlu0 %644
        %v646 = vrsqrt.pop %v615
        %v647 = vmul.f32 %v615, %v646
        %vm648 = vcmp.eq.f32.partialorder %v615, inf
        %v649 = vsel %vm648, %v615, %v647
        %vm650 = vcmp.eq.f32.partialorder %v615, 0.0
        %v651 = vand.u32 %v615, 2147483648
        %v652 = vsel %vm650, %v651, %v649
        %v653 = vrsqrt.pop %v617
        %v654 = vmul.f32 %v617, %v653
        %vm655 = vcmp.eq.f32.partialorder %v617, inf
        %v656 = vsel %vm655, %v617, %v654
        %vm657 = vcmp.eq.f32.partialorder %v617, 0.0
        %v658 = vand.u32 %v617, 2147483648
        %v659 = vsel %vm657, %v658, %v656
        %v660 = vrsqrt.pop %v619
        %v661 = vmul.f32 %v619, %v660
        %vm662 = vcmp.eq.f32.partialorder %v619, inf
        %v663 = vsel %vm662, %v619, %v661
        %vm664 = vcmp.eq.f32.partialorder %v619, 0.0
        %v665 = vand.u32 %v619, 2147483648
        %v666 = vsel %vm664, %v665, %v663
        %v667 = vrsqrt.pop %v621
        %v668 = vmul.f32 %v621, %v667
        %vm669 = vcmp.eq.f32.partialorder %v621, inf
        %v670 = vsel %vm669, %v621, %v668
        %vm671 = vcmp.eq.f32.partialorder %v621, 0.0
        %v672 = vand.u32 %v621, 2147483648
        %v673 = vsel %vm671, %v672, %v670
        %v674 = vrsqrt.pop %v623
        %v675 = vmul.f32 %v623, %v674
        %vm676 = vcmp.eq.f32.partialorder %v623, inf
        %v677 = vsel %vm676, %v623, %v675
        %vm678 = vcmp.eq.f32.partialorder %v623, 0.0
        %v679 = vand.u32 %v623, 2147483648
        %v680 = vsel %vm678, %v679, %v677
        %v681 = vrsqrt.pop %v625
        %v682 = vmul.f32 %v625, %v681
        %vm683 = vcmp.eq.f32.partialorder %v625, inf
        %v684 = vsel %vm683, %v625, %v682
        %vm685 = vcmp.eq.f32.partialorder %v625, 0.0
        %v686 = vand.u32 %v625, 2147483648
        %v687 = vsel %vm685, %v686, %v684
        %v688 = vrsqrt.pop %v627
        %v689 = vmul.f32 %v627, %v688
        %vm690 = vcmp.eq.f32.partialorder %v627, inf
        %v691 = vsel %vm690, %v627, %v689
        %vm692 = vcmp.eq.f32.partialorder %v627, 0.0
        %v693 = vand.u32 %v627, 2147483648
        %v694 = vsel %vm692, %v693, %v691
        %v695 = vrsqrt.pop %v629
        %v696 = vmul.f32 %v629, %v695
        %vm697 = vcmp.eq.f32.partialorder %v629, inf
        %v698 = vsel %vm697, %v629, %v696
        %vm699 = vcmp.eq.f32.partialorder %v629, 0.0
        %v700 = vand.u32 %v629, 2147483648
        %v701 = vsel %vm699, %v700, %v698
        %v702 = vrsqrt.pop %v631
        %v703 = vmul.f32 %v631, %v702
        %vm704 = vcmp.eq.f32.partialorder %v631, inf
        %v705 = vsel %vm704, %v631, %v703
        %vm706 = vcmp.eq.f32.partialorder %v631, 0.0
        %v707 = vand.u32 %v631, 2147483648
        %v708 = vsel %vm706, %v707, %v705
        %v709 = vrsqrt.pop %v633
        %v710 = vmul.f32 %v633, %v709
        %vm711 = vcmp.eq.f32.partialorder %v633, inf
        %v712 = vsel %vm711, %v633, %v710
        %vm713 = vcmp.eq.f32.partialorder %v633, 0.0
        %v714 = vand.u32 %v633, 2147483648
        %v715 = vsel %vm713, %v714, %v712
        %v716 = vrsqrt.pop %v635
        %v717 = vmul.f32 %v635, %v716
        %vm718 = vcmp.eq.f32.partialorder %v635, inf
        %v719 = vsel %vm718, %v635, %v717
        %vm720 = vcmp.eq.f32.partialorder %v635, 0.0
        %v721 = vand.u32 %v635, 2147483648
        %v722 = vsel %vm720, %v721, %v719
        %v723 = vrsqrt.pop %v637
        %v724 = vmul.f32 %v637, %v723
        %vm725 = vcmp.eq.f32.partialorder %v637, inf
        %v726 = vsel %vm725, %v637, %v724
        %vm727 = vcmp.eq.f32.partialorder %v637, 0.0
        %v728 = vand.u32 %v637, 2147483648
        %v729 = vsel %vm727, %v728, %v726
        %v730 = vrsqrt.pop %v639
        %v731 = vmul.f32 %v639, %v730
        %vm732 = vcmp.eq.f32.partialorder %v639, inf
        %v733 = vsel %vm732, %v639, %v731
        %vm734 = vcmp.eq.f32.partialorder %v639, 0.0
        %v735 = vand.u32 %v639, 2147483648
        %v736 = vsel %vm734, %v735, %v733
        %v737 = vrsqrt.pop %v641
        %v738 = vmul.f32 %v641, %v737
        %vm739 = vcmp.eq.f32.partialorder %v641, inf
        %v740 = vsel %vm739, %v641, %v738
        %vm741 = vcmp.eq.f32.partialorder %v641, 0.0
        %v742 = vand.u32 %v641, 2147483648
        %v743 = vsel %vm741, %v742, %v740
        %v744 = vrsqrt.pop %v643
        %v745 = vmul.f32 %v643, %v744
        %vm746 = vcmp.eq.f32.partialorder %v643, inf
        %v747 = vsel %vm746, %v643, %v745
        %vm748 = vcmp.eq.f32.partialorder %v643, 0.0
        %v749 = vand.u32 %v643, 2147483648
        %v750 = vsel %vm748, %v749, %v747
        %v751 = vrsqrt.pop %v645
        %v752 = vmul.f32 %v645, %v751
        %vm753 = vcmp.eq.f32.partialorder %v645, inf
        %v754 = vsel %vm753, %v645, %v752
        %vm755 = vcmp.eq.f32.partialorder %v645, 0.0
        %v756 = vand.u32 %v645, 2147483648
        %v757 = vsel %vm755, %v756, %v754
        %s758 = sld [smem:[#allocation2]]
        %v759 = vstv %s758
        %v760 = vsub.f32 %v652, %v759
        %v761 = vsub.f32 %v659, %v759
        %v762 = vsub.f32 %v666, %v759
        %v763 = vsub.f32 %v673, %v759
        %v764 = vsub.f32 %v680, %v759
        %v765 = vsub.f32 %v687, %v759
        %v766 = vsub.f32 %v694, %v759
        %v767 = vsub.f32 %v701, %v759
        %v768 = vsub.f32 %v708, %v759
        %v769 = vsub.f32 %v715, %v759
        %v770 = vsub.f32 %v722, %v759
        %v771 = vsub.f32 %v729, %v759
        %v772 = vsub.f32 %v736, %v759
        %v773 = vsub.f32 %v743, %v759
        %v774 = vsub.f32 %v750, %v759
        %v775 = vsub.f32 %v757, %v759
        %v776 = vmax.f32 %v760, 0.0
        %v777 = vmax.f32 %v761, 0.0
        %v778 = vmax.f32 %v762, 0.0
        %v779 = vmax.f32 %v763, 0.0
        %v780 = vmax.f32 %v764, 0.0
        %v781 = vmax.f32 %v765, 0.0
        %v782 = vmax.f32 %v766, 0.0
        %v783 = vmax.f32 %v767, 0.0
        %v784 = vmax.f32 %v768, 0.0
        %v785 = vmax.f32 %v769, 0.0
        %v786 = vmax.f32 %v770, 0.0
        %v787 = vmax.f32 %v771, 0.0
        %v788 = vmax.f32 %v772, 0.0
        %v789 = vmax.f32 %v773, 0.0
        %v790 = vmax.f32 %v774, 0.0
        %v791 = vmax.f32 %v775, 0.0
        %s792 = smul.u32 %s25, 5
        %s793 = sadd.s32 %s792, %s26
        %s794 = smul.u32 %s793, 128
        %v795 = vlaneseq
        %v796 = vshrl.u32 %v795, 7
        %v797 = vadd.s32 %v796, 8
        %v798 = vadd.s32 %v796, 16
        %v799 = vadd.s32 %v796, 24
        %v800 = vadd.s32 %v796, 32
        %v801 = vadd.s32 %v796, 40
        %v802 = vadd.s32 %v796, 48
        %v803 = vadd.s32 %v796, 56
        %v804 = vadd.s32 %v796, 64
        %v805 = vadd.s32 %v796, 72
        %v806 = vadd.s32 %v796, 80
        %v807 = vadd.s32 %v796, 88
        %v808 = vadd.s32 %v796, 96
        %v809 = vadd.s32 %v796, 104
        %v810 = vadd.s32 %v796, 112
        %v811 = vadd.s32 %v796, 120
        %v812 = vstv %s794
        %v813 = vadd.s32 %v812, %v796
        %v814 = vadd.s32 %v812, %v797
        %v815 = vadd.s32 %v812, %v798
        %v816 = vadd.s32 %v812, %v799
        %v817 = vadd.s32 %v812, %v800
        %v818 = vadd.s32 %v812, %v801
        %v819 = vadd.s32 %v812, %v802
        %v820 = vadd.s32 %v812, %v803
        %v821 = vadd.s32 %v812, %v804
        %v822 = vadd.s32 %v812, %v805
        %v823 = vadd.s32 %v812, %v806
        %v824 = vadd.s32 %v812, %v807
        %v825 = vadd.s32 %v812, %v808
        %v826 = vadd.s32 %v812, %v809
        %v827 = vadd.s32 %v812, %v810
        %v828 = vadd.s32 %v812, %v811
        %vm829 = vcmp.lt.s32.totalorder %v813, 529
        %vm830 = vcmp.lt.s32.totalorder %v814, 529
        %vm831 = vcmp.lt.s32.totalorder %v815, 529
        %vm832 = vcmp.lt.s32.totalorder %v816, 529
        %vm833 = vcmp.lt.s32.totalorder %v817, 529
        %vm834 = vcmp.lt.s32.totalorder %v818, 529
        %vm835 = vcmp.lt.s32.totalorder %v819, 529
        %vm836 = vcmp.lt.s32.totalorder %v820, 529
        %vm837 = vcmp.lt.s32.totalorder %v821, 529
        %vm838 = vcmp.lt.s32.totalorder %v822, 529
        %vm839 = vcmp.lt.s32.totalorder %v823, 529
        %vm840 = vcmp.lt.s32.totalorder %v824, 529
        %vm841 = vcmp.lt.s32.totalorder %v825, 529
        %vm842 = vcmp.lt.s32.totalorder %v826, 529
        %vm843 = vcmp.lt.s32.totalorder %v827, 529
        %vm844 = vcmp.lt.s32.totalorder %v828, 529
        %v845 = vsel %vm829, %v776, 0.0
        %v846 = vsel %vm830, %v777, 0.0
        %v847 = vsel %vm831, %v778, 0.0
        %v848 = vsel %vm832, %v779, 0.0
        %v849 = vsel %vm833, %v780, 0.0
        %v850 = vsel %vm834, %v781, 0.0
        %v851 = vsel %vm835, %v782, 0.0
        %v852 = vsel %vm836, %v783, 0.0
        %v853 = vsel %vm837, %v784, 0.0
        %v854 = vsel %vm838, %v785, 0.0
        %v855 = vsel %vm839, %v786, 0.0
        %v856 = vsel %vm840, %v787, 0.0
        %v857 = vsel %vm841, %v788, 0.0
        %v858 = vsel %vm842, %v789, 0.0
        %v859 = vsel %vm843, %v790, 0.0
        %v860 = vsel %vm844, %v791, 0.0
        %v861 = vunpack.c.l.bf16 %v254
        %v862 = vunpack.c.h.bf16 %v254
        %v863 = vunpack.c.l.bf16 %v255
        %v864 = vunpack.c.h.bf16 %v255
        %v865 = vunpack.c.l.bf16 %v256
        %v866 = vunpack.c.h.bf16 %v256
        %v867 = vunpack.c.l.bf16 %v257
        %v868 = vunpack.c.h.bf16 %v257
        %v869 = vunpack.c.l.bf16 %v258
        %v870 = vunpack.c.h.bf16 %v258
        %v871 = vunpack.c.l.bf16 %v259
        %v872 = vunpack.c.h.bf16 %v259
        %v873 = vunpack.c.l.bf16 %v260
        %v874 = vunpack.c.h.bf16 %v260
        %v875 = vunpack.c.l.bf16 %v261
        %v876 = vunpack.c.h.bf16 %v261
        %v877 = vunpack.c.l.bf16 %v262
        %v878 = vunpack.c.h.bf16 %v262
        %v879 = vunpack.c.l.bf16 %v263
        %v880 = vunpack.c.h.bf16 %v263
        %v881 = vunpack.c.l.bf16 %v264
        %v882 = vunpack.c.h.bf16 %v264
        %v883 = vunpack.c.l.bf16 %v265
        %v884 = vunpack.c.h.bf16 %v265
        %v885 = vunpack.c.l.bf16 %v266
        %v886 = vunpack.c.h.bf16 %v266
        %v887 = vunpack.c.l.bf16 %v267
        %v888 = vunpack.c.h.bf16 %v267
        %v889 = vunpack.c.l.bf16 %v268
        %v890 = vunpack.c.h.bf16 %v268
        %v891 = vunpack.c.l.bf16 %v269
        %v892 = vunpack.c.h.bf16 %v269
        %v893 = vmul.f32 %v845, %v861
        %v894 = vmul.f32 %v845, %v862
        %v895 = vmul.f32 %v846, %v863
        %v896 = vmul.f32 %v846, %v864
        %v897 = vmul.f32 %v847, %v865
        %v898 = vmul.f32 %v847, %v866
        %v899 = vmul.f32 %v848, %v867
        %v900 = vmul.f32 %v848, %v868
        %v901 = vmul.f32 %v849, %v869
        %v902 = vmul.f32 %v849, %v870
        %v903 = vmul.f32 %v850, %v871
        %v904 = vmul.f32 %v850, %v872
        %v905 = vmul.f32 %v851, %v873
        %v906 = vmul.f32 %v851, %v874
        %v907 = vmul.f32 %v852, %v875
        %v908 = vmul.f32 %v852, %v876
        %v909 = vmul.f32 %v853, %v877
        %v910 = vmul.f32 %v853, %v878
        %v911 = vmul.f32 %v854, %v879
        %v912 = vmul.f32 %v854, %v880
        %v913 = vmul.f32 %v855, %v881
        %v914 = vmul.f32 %v855, %v882
        %v915 = vmul.f32 %v856, %v883
        %v916 = vmul.f32 %v856, %v884
        %v917 = vmul.f32 %v857, %v885
        %v918 = vmul.f32 %v857, %v886
        %v919 = vmul.f32 %v858, %v887
        %v920 = vmul.f32 %v858, %v888
        %v921 = vmul.f32 %v859, %v889
        %v922 = vmul.f32 %v859, %v890
        %v923 = vmul.f32 %v860, %v891
        %v924 = vmul.f32 %v860, %v892
        %v925 = vadd.f32 %v893, %v895
        %v926 = vadd.f32 %v925, %v897
        %v927 = vadd.f32 %v926, %v899
        %v928 = vadd.f32 %v927, %v901
        %v929 = vadd.f32 %v928, %v903
        %v930 = vadd.f32 %v929, %v905
        %v931 = vadd.f32 %v930, %v907
        %v932 = vadd.f32 %v931, %v909
        %v933 = vadd.f32 %v932, %v911
        %v934 = vadd.f32 %v933, %v913
        %v935 = vadd.f32 %v934, %v915
        %v936 = vadd.f32 %v935, %v917
        %v937 = vadd.f32 %v936, %v919
        %v938 = vadd.f32 %v937, %v921
        %v939 = vadd.f32 %v938, %v923
        %v940 = vadd.f32 %v894, %v896
        %v941 = vadd.f32 %v940, %v898
        %v942 = vadd.f32 %v941, %v900
        %v943 = vadd.f32 %v942, %v902
        %v944 = vadd.f32 %v943, %v904
        %v945 = vadd.f32 %v944, %v906
        %v946 = vadd.f32 %v945, %v908
        %v947 = vadd.f32 %v946, %v910
        %v948 = vadd.f32 %v947, %v912
        %v949 = vadd.f32 %v948, %v914
        %v950 = vadd.f32 %v949, %v916
        %v951 = vadd.f32 %v950, %v918
        %v952 = vadd.f32 %v951, %v920
        %v953 = vadd.f32 %v952, %v922
        %v954 = vadd.f32 %v953, %v924
        %v955 = vadd.f32 %v845, %v846
        %v956 = vadd.f32 %v955, %v847
        %v957 = vadd.f32 %v956, %v848
        %v958 = vadd.f32 %v957, %v849
        %v959 = vadd.f32 %v958, %v850
        %v960 = vadd.f32 %v959, %v851
        %v961 = vadd.f32 %v960, %v852
        %v962 = vadd.f32 %v961, %v853
        %v963 = vadd.f32 %v962, %v854
        %v964 = vadd.f32 %v963, %v855
        %v965 = vadd.f32 %v964, %v856
        %v966 = vadd.f32 %v965, %v857
        %v967 = vadd.f32 %v966, %v858
        %v968 = vadd.f32 %v967, %v859
        %v969 = vadd.f32 %v968, %v860
        %v970 = vld [vmem:[#allocation8] sm:$0xff]
        %v971 = vld [vmem:[#allocation8 + $0x8] sm:$0xff]
        %v972 = vsub.f32 %v969, %v939
        %v973 = vsub.f32 %v969, %v954
        %v974 = vadd.f32 %v970, %v972
        %v975 = vadd.f32 %v971, %v973
        %976 = vst [vmem:[#allocation8] sm:$0xff] %v974
        %977 = vst [vmem:[#allocation8 + $0x8] sm:$0xff] %v975
        // Predicated region
        $region49: #{tpu_custom_call.1} parent=35 // pred_check
          %p978 = pneg %p144
        $region50: #{tpu_custom_call.1} parent=35 // pred_check_branch
          %980 = sbr.rel (%p978) target = $region52
        $region51: #{tpu_custom_call.1} parent=35 // pred_region
          %s982 = ssub.s32 256, 256
          %983 = vsyncadd [#allocation5], %s982
          %s984 = smul.addr %s25, 2
          %s985 = smul.addr %s984, 128
          %s986 = scalar_lea.hbm %s4, %s985
          %s988 = sshll.u32 [#allocation8], 4
          %s989 = int_to_ptr.vmem [resolvable:$true] %s988
          %991 = dma.vmem_to_hbm [thread:$0]  %s989, 256, %s986, [#allocation5]
        $region52: #{tpu_custom_call.1} parent=35 // pred_fallthru
          _
        // Predicated region
        $region53: #{tpu_custom_call.1} parent=35 // pred_check
          %p992 = pneg %p144
        $region54: #{tpu_custom_call.1} parent=35 // pred_check_branch
          %994 = sbr.rel (%p992) target = $region56
        $region55: #{tpu_custom_call.1} parent=35 // pred_region
          %995 = dma.done [#allocation5], 256
        $region56: #{tpu_custom_call.1} parent=35 // pred_fallthru
          _
      $region36: #{tpu_custom_call.1} parent=5 // pred_fallthru
        _
      %p996 = scmp.le.s32.totalorder 2, %s16
      // Predicated region
      $region57: #{tpu_custom_call.1} parent=5 // pred_check
        %p997 = pneg %p996
      $region58: #{tpu_custom_call.1} parent=5 // pred_check_branch
        %999 = sbr.rel (%p997) target = $region60
      $region59: #{tpu_custom_call.1} parent=5 // pred_region
        %s1000 = ssub.s32 %s16, 2
      $region60: #{tpu_custom_call.1} parent=5 // pred_fallthru
        _
    $region6: #{tpu_custom_call.1} parent=1 // loop_footer
      %s20 = sadd.s32 1, %s16
    $region7: #{tpu_custom_call.1} parent=1 // loop_footer_branch
      %15 = sbr.rel target = $region3
    $region8: #{tpu_custom_call.1} parent=1 // loop_exit
      _
    %1001 = vsyncpa [#allocation4], 1
    %s1002 = scalar_lea.sflag [#allocation4], 1
    %1003 = vsyncpa %s1002, 1
    %1004 = vsyncpa [#allocation7], 1
    %1005 = vsyncpa [#allocation5], 1
    %s1006 = scalar_lea.sflag [#allocation5], 1
    %1007 = vsyncpa %s1006, 1

</llo_original>
